<compile_context>
chip_gen: v7x
topology: tpu7x:2x2x1
jax: 0.10.0
libtpu: 0.0.40
codegen_flags: <defaults>
</compile_context>

<pallas_src>
import jax
import jax.numpy as jnp
from jax.experimental import pallas as pl
from jax.experimental.pallas import tpu as pltpu


FEATURE_SIZE = 1280          # efficientnet_b0 feature width
NUM_CLASSES = 3
OUT_PAD = 128                # lane-dense (unmasked-store) output width
MAX_TB = 512                 # upper bound on batch tile rows
IMG_BUF_BYTES = 8 << 20      # per-buffer image VMEM budget (Pallas double-buffers it)


def _round_up(x, m):
    return (x + m - 1) // m * m


def _cdiv(a, b):
    return -(-a // b)


def _enhanced_crop_kernel(img_ref, vis_ref,
                          pw_ref, pb_ref,
                          vw1_ref, vb1_ref, vw2_ref, vb2_ref, vw3_ref, vb3_ref,
                          cw1a_ref, cw1b_ref, cb1_ref,
                          cw2_ref, cb2_ref,
                          cw3_ref, cb3_ref,
                          out_ref):
    f32 = jnp.float32
    bf16 = jnp.bfloat16

    TB = img_ref.shape[0]
    C = pw_ref.shape[0]
    HW = img_ref.shape[1] // C
    inv_hw = 1.0 / float(HW)

    # ---- backbone stand-in: per-channel GAP (f32 accumulation over the lane axis)
    #      + K=C (=3) projection done as C VPU broadcast-FMAs (too tiny for the MXU) ----
    pw = pw_ref[...].astype(f32)                                    # [C, 1280]
    acc = jnp.broadcast_to(pb_ref[...].astype(f32), (TB, pw.shape[1]))
    for c in range(C):                                              # static loop, C == 3
        ch = img_ref[:, c * HW:(c + 1) * HW].astype(f32)            # [TB, HW] lane-dense
        pooled_c = jnp.sum(ch, axis=-1, keepdims=True) * inv_hw     # [TB, 1]
        acc = acc + pooled_c * pw[c][None, :]
    image_features = jnp.maximum(acc, 0.0)                          # [TB, 1280] f32

    # ---- visual_net: Linear(5,32)-ReLU-Drop-Linear(32,64)-ReLU-Drop-Linear(64,32) ----
    # Tiny matmuls; hidden under the image DMA.
    v = vis_ref[...].astype(f32)                                    # [TB, 5]
    h = jnp.maximum(jnp.dot(v, vw1_ref[...], preferred_element_type=f32) + vb1_ref[...], 0.0)
    h = jnp.maximum(jnp.dot(h, vw2_ref[...], preferred_element_type=f32) + vb2_ref[...], 0.0)
    h = jnp.dot(h, vw3_ref[...], preferred_element_type=f32) + vb3_ref[...]     # [TB, 32]

    # ---- classifier on concat([image_features, h], dim=1) as an exact split matmul;
    #      bf16 operands -> native MXU path, f32 accumulation ----
    z = jnp.maximum(
        jnp.dot(image_features.astype(bf16), cw1a_ref[...], preferred_element_type=f32)
        + jnp.dot(h.astype(bf16), cw1b_ref[...], preferred_element_type=f32)
        + cb1_ref[...],
        0.0)                                                        # [TB, 256]
    z = jnp.maximum(jnp.dot(z.astype(bf16), cw2_ref[...], preferred_element_type=f32)
                    + cb2_ref[...], 0.0)                            # [TB, 128]
    # 128-lane zero-padded head -> unmasked stores; wrapper slices back to 3 classes.
    out_ref[...] = (jnp.dot(z.astype(bf16), cw3_ref[...], preferred_element_type=f32)
                    + cb3_ref[...]).astype(out_ref.dtype)


@jax.jit
def enhanced_crop_classifier_forward(images, visual_features, params):
    """images: [B, C, H, W] float32 (NCHW);  visual_features: [B, 5] float32."""
    B, C, H, W = images.shape
    HW = H * W

    # bf16 image halves the dominant HBM read; dense 2-D [B, C*HW] layout avoids the
    # C=3 sublane padding of a [B, C, HW] block.  GAP still accumulates in f32.
    img = images.astype(jnp.bfloat16).reshape(B, C * HW)

    # ---- batch tile: as big as the image VMEM budget allows; >=2 grid steps when the
    #      batch permits it so ("parallel",) can shard across v7x's two TensorCores ----
    row_bytes = C * HW * img.dtype.itemsize
    tb_cap = max(8, min(MAX_TB, (IMG_BUF_BYTES // row_bytes) // 8 * 8))
    n_steps = max(1, _cdiv(B, tb_cap))
    if n_steps == 1 and B > 8:
        n_steps = 2
    TB = max(8, _round_up(_cdiv(B, n_steps), 8))
    Bp = TB * n_steps

    if Bp != B:
        img = jnp.pad(img, ((0, Bp - B), (0, 0)))
        vis = jnp.pad(visual_features, ((0, Bp - B), (0, 0)))
    else:
        vis = visual_features

    bf16 = jnp.bfloat16
    # pad the 3-wide classifier head to 128 output lanes (unmasked vst)
    c_w3p = jnp.pad(params["c_w3"], ((0, 0), (0, OUT_PAD - NUM_CLASSES)))
    c_b3p = jnp.pad(params["c_b3"], ((0, 0), (0, OUT_PAD - NUM_CLASSES)))

    weights = (
        params["proj_w"], params["proj_b"],
        params["v_w1"], params["v_b1"],
        params["v_w2"], params["v_b2"],
        params["v_w3"], params["v_b3"],
        params["c_w1_img"].astype(bf16), params["c_w1_vis"].astype(bf16), params["c_b1"],
        params["c_w2"].astype(bf16), params["c_b2"],
        c_w3p.astype(bf16), c_b3p,
    )

    def pinned(w):
        # weights: full-block, pinned to block 0 on every grid step (stay VMEM-resident)
        return pl.BlockSpec(w.shape, lambda i, _nd=w.ndim: (0,) * _nd)

    def _nbytes(a):
        return a.size * a.dtype.itemsize

    # VMEM budget: double-buffered image / visual / output tiles + pinned (padded) weights.
    vmem_limit = int(
        2 * (TB * C * HW * img.dtype.itemsize          # image tile x2 buffers
             + TB * 128 * 4                            # visual tile (lane-padded)
             + TB * OUT_PAD * 4)                       # output tile
        + 4 * sum(_nbytes(w) for w in weights)         # pinned weights (+ padding slack)
        + (8 << 20))
    vmem_limit = max(32 << 20, min(vmem_limit, 56 << 20))   # fits v7x's 64 MiB physical

    flops = 2 * Bp * (C * HW + C * FEATURE_SIZE
                      + 5 * 32 + 32 * 64 + 64 * 32
                      + FEATURE_SIZE * 256 + 32 * 256 + 256 * 128 + 128 * OUT_PAD)
    bytes_accessed = (_nbytes(img) + _nbytes(vis) + Bp * OUT_PAD * 4
                      + sum(_nbytes(w) for w in weights))
    cost = pl.CostEstimate(flops=flops, transcendentals=0, bytes_accessed=bytes_accessed)

    grid = (Bp // TB,)
    out = pl.pallas_call(
        _enhanced_crop_kernel,
        out_shape=jax.ShapeDtypeStruct((Bp, OUT_PAD), jnp.float32),
        grid=grid,
        in_specs=[pl.BlockSpec((TB, C * HW), lambda i: (i, 0)),
                  pl.BlockSpec((TB, 5), lambda i: (i, 0))]
                 + [pinned(w) for w in weights],
        out_specs=pl.BlockSpec((TB, OUT_PAD), lambda i: (i, 0)),
        compiler_params=pltpu.CompilerParams(
            dimension_semantics=("parallel",),        # batch axis -> both TCs on v7x
            vmem_limit_bytes=vmem_limit),
        cost_estimate=cost,
    )(img, vis, *weights)

    return out[:B, :NUM_CLASSES]


def init_params(key, in_channels=3):
    """Deterministic synthetic parameters (shapes match the PyTorch module)."""
    ks = jax.random.split(key, 16)

    def lin(k, fan_in, fan_out):
        scale = 1.0 / jnp.sqrt(jnp.float32(fan_in))
        w = jax.random.uniform(k, (fan_in, fan_out), jnp.float32, -scale, scale)
        b = jnp.zeros((1, fan_out), jnp.float32)
        return w, b

    proj_w, proj_b = lin(ks[0], in_channels, FEATURE_SIZE)     # backbone stand-in
    v_w1, v_b1 = lin(ks[1], 5, 32)
    v_w2, v_b2 = lin(ks[2], 32, 64)
    v_w3, v_b3 = lin(ks[3], 64, 32)
    # classifier Linear(1280+32, 256) stored split: image part + visual part
    c_w1_full, c_b1 = lin(ks[4], FEATURE_SIZE + 32, 256)
    c_w1_img = c_w1_full[:FEATURE_SIZE]
    c_w1_vis = c_w1_full[FEATURE_SIZE:]
    c_w2, c_b2 = lin(ks[5], 256, 128)
    c_w3, c_b3 = lin(ks[6], 128, NUM_CLASSES)

    return dict(
        proj_w=proj_w, proj_b=proj_b,
        v_w1=v_w1, v_b1=v_b1, v_w2=v_w2, v_b2=v_b2, v_w3=v_w3, v_b3=v_b3,
        c_w1_img=c_w1_img, c_w1_vis=c_w1_vis, c_b1=c_b1,
        c_w2=c_w2, c_b2=c_b2, c_w3=c_w3, c_b3=c_b3,
    )


def _reference_forward(images, visual_features, params):
    """Plain-JAX f32 reference of the same forward pass (for a sanity check)."""
    pooled = jnp.mean(images, axis=(2, 3))
    feat = jnp.maximum(pooled @ params["proj_w"] + params["proj_b"], 0.0)
    h = jnp.maximum(visual_features @ params["v_w1"] + params["v_b1"], 0.0)
    h = jnp.maximum(h @ params["v_w2"] + params["v_b2"], 0.0)
    h = h @ params["v_w3"] + params["v_b3"]
    combined = jnp.concatenate([feat, h], axis=1)
    c_w1 = jnp.concatenate([params["c_w1_img"], params["c_w1_vis"]], axis=0)
    z = jnp.maximum(combined @ c_w1 + params["c_b1"], 0.0)
    z = jnp.maximum(z @ params["c_w2"] + params["c_b2"], 0.0)
    return z @ params["c_w3"] + params["c_b3"]


if __name__ == "__main__":
    key = jax.random.PRNGKey(0)
    k_img, k_vis, k_par = jax.random.split(key, 3)

    B, C, H, W = 2, 3, 32, 32           # small NCHW image batch
    images = jax.random.normal(k_img, (B, C, H, W), jnp.float32)
    visual_features = jax.random.normal(k_vis, (B, 5), jnp.float32)
    params = init_params(k_par, in_channels=C)

    out = enhanced_crop_classifier_forward(images, visual_features, params)
    out = jax.block_until_ready(out)

    ref = _reference_forward(images, visual_features, params)
    assert out.shape == (B, NUM_CLASSES)
    # bf16 image + bf16 classifier weights (f32 accumulation) vs. pure-f32 reference
    assert jnp.allclose(out, ref, atol=2e-2, rtol=2e-2)

    print("KERNEL_OK")
</pallas_src>

<mosaic_0001>
module attributes {stable_mosaic.version = 11 : i64} {
  func.func @_enhanced_crop_kernel(%arg0: i32, %arg1: memref<8x3072xbf16, #tpu.memory_space<vmem>>, %arg2: memref<8x5xf32, #tpu.memory_space<vmem>>, %arg3: memref<3x1280xf32, #tpu.memory_space<vmem>>, %arg4: memref<1x1280xf32, #tpu.memory_space<vmem>>, %arg5: memref<5x32xf32, #tpu.memory_space<vmem>>, %arg6: memref<1x32xf32, #tpu.memory_space<vmem>>, %arg7: memref<32x64xf32, #tpu.memory_space<vmem>>, %arg8: memref<1x64xf32, #tpu.memory_space<vmem>>, %arg9: memref<64x32xf32, #tpu.memory_space<vmem>>, %arg10: memref<1x32xf32, #tpu.memory_space<vmem>>, %arg11: memref<1280x256xbf16, #tpu.memory_space<vmem>>, %arg12: memref<32x256xbf16, #tpu.memory_space<vmem>>, %arg13: memref<1x256xf32, #tpu.memory_space<vmem>>, %arg14: memref<256x128xbf16, #tpu.memory_space<vmem>>, %arg15: memref<1x128xf32, #tpu.memory_space<vmem>>, %arg16: memref<128x128xbf16, #tpu.memory_space<vmem>>, %arg17: memref<1x128xf32, #tpu.memory_space<vmem>>, %arg18: memref<8x128xf32, #tpu.memory_space<vmem>>) attributes {dimension_semantics = [#tpu.dimension_semantics<parallel>], iteration_bounds = array<i64: 1>, scalar_prefetch = 0 : i64, scratch_operands = 0 : i64, tpu.core_type = #tpu.core_type<tc>, window_params = [{transform_indices = @transform_0, window_bounds = array<i64: 8, 3072>}, {transform_indices = @transform_1, window_bounds = array<i64: 8, 5>}, {pipeline_mode = #tpu.pipeline_mode<synchronous>, transform_indices = @transform_2, window_bounds = array<i64: 3, 1280>}, {pipeline_mode = #tpu.pipeline_mode<synchronous>, transform_indices = @transform_3, window_bounds = array<i64: 1, 1280>}, {pipeline_mode = #tpu.pipeline_mode<synchronous>, transform_indices = @transform_4, window_bounds = array<i64: 5, 32>}, {pipeline_mode = #tpu.pipeline_mode<synchronous>, transform_indices = @transform_5, window_bounds = array<i64: 1, 32>}, {pipeline_mode = #tpu.pipeline_mode<synchronous>, transform_indices = @transform_6, window_bounds = array<i64: 32, 64>}, {pipeline_mode = #tpu.pipeline_mode<synchronous>, transform_indices = @transform_7, window_bounds = array<i64: 1, 64>}, {pipeline_mode = #tpu.pipeline_mode<synchronous>, transform_indices = @transform_8, window_bounds = array<i64: 64, 32>}, {pipeline_mode = #tpu.pipeline_mode<synchronous>, transform_indices = @transform_9, window_bounds = array<i64: 1, 32>}, {pipeline_mode = #tpu.pipeline_mode<synchronous>, transform_indices = @transform_10, window_bounds = array<i64: 1280, 256>}, {pipeline_mode = #tpu.pipeline_mode<synchronous>, transform_indices = @transform_11, window_bounds = array<i64: 32, 256>}, {pipeline_mode = #tpu.pipeline_mode<synchronous>, transform_indices = @transform_12, window_bounds = array<i64: 1, 256>}, {pipeline_mode = #tpu.pipeline_mode<synchronous>, transform_indices = @transform_13, window_bounds = array<i64: 256, 128>}, {pipeline_mode = #tpu.pipeline_mode<synchronous>, transform_indices = @transform_14, window_bounds = array<i64: 1, 128>}, {pipeline_mode = #tpu.pipeline_mode<synchronous>, transform_indices = @transform_15, window_bounds = array<i64: 128, 128>}, {pipeline_mode = #tpu.pipeline_mode<synchronous>, transform_indices = @transform_16, window_bounds = array<i64: 1, 128>}, {transform_indices = @transform_17, window_bounds = array<i64: 8, 128>}]} {
    %c0 = arith.constant 0 : index
    %c0_0 = arith.constant 0 : index
    %0 = vector.load %arg3[%c0, %c0_0] : memref<3x1280xf32, #tpu.memory_space<vmem>>, vector<3x1280xf32>
    %c0_1 = arith.constant 0 : index
    %c0_2 = arith.constant 0 : index
    %1 = vector.load %arg4[%c0_1, %c0_2] : memref<1x1280xf32, #tpu.memory_space<vmem>>, vector<1x1280xf32>
    %2 = vector.shape_cast %1 : vector<1x1280xf32> to vector<1x1280xf32>
    %3 = vector.broadcast %2 : vector<1x1280xf32> to vector<8x1280xf32>
    %c0_3 = arith.constant 0 : index
    %c0_4 = arith.constant 0 : index
    %4 = vector.load %arg1[%c0_3, %c0_4] : memref<8x3072xbf16, #tpu.memory_space<vmem>>, vector<8x1024xbf16>
    %5 = arith.extf %4 : vector<8x1024xbf16> to vector<8x1024xf32>
    %cst = arith.constant dense<0.000000e+00> : vector<8xf32>
    %6 = vector.multi_reduction <add>, %5, %cst [1] : vector<8x1024xf32> to vector<8xf32>
    %7 = vector.shape_cast %6 : vector<8xf32> to vector<8x1xf32>
    %cst_5 = arith.constant 9.765625E-4 : f32
    %8 = vector.broadcast %cst_5 : f32 to vector<8x1xf32>
    %9 = arith.mulf %7, %8 : vector<8x1xf32>
    %10 = vector.extract_strided_slice %0 {offsets = [0, 0], sizes = [1, 1280], strides = [1, 1]} : vector<3x1280xf32> to vector<1x1280xf32>
    %11 = vector.shape_cast %10 : vector<1x1280xf32> to vector<1280xf32>
    %12 = vector.shape_cast %11 : vector<1280xf32> to vector<1x1280xf32>
    %13 = vector.broadcast %9 : vector<8x1xf32> to vector<8x1280xf32>
    %14 = vector.broadcast %12 : vector<1x1280xf32> to vector<8x1280xf32>
    %15 = arith.mulf %13, %14 : vector<8x1280xf32>
    %16 = arith.addf %3, %15 : vector<8x1280xf32>
    %c0_6 = arith.constant 0 : index
    %c1024 = arith.constant 1024 : index
    %17 = vector.load %arg1[%c0_6, %c1024] : memref<8x3072xbf16, #tpu.memory_space<vmem>>, vector<8x1024xbf16>
    %18 = arith.extf %17 : vector<8x1024xbf16> to vector<8x1024xf32>
    %cst_7 = arith.constant dense<0.000000e+00> : vector<8xf32>
    %19 = vector.multi_reduction <add>, %18, %cst_7 [1] : vector<8x1024xf32> to vector<8xf32>
    %20 = vector.shape_cast %19 : vector<8xf32> to vector<8x1xf32>
    %cst_8 = arith.constant 9.765625E-4 : f32
    %21 = vector.broadcast %cst_8 : f32 to vector<8x1xf32>
    %22 = arith.mulf %20, %21 : vector<8x1xf32>
    %23 = vector.extract_strided_slice %0 {offsets = [1, 0], sizes = [1, 1280], strides = [1, 1]} : vector<3x1280xf32> to vector<1x1280xf32>
    %24 = vector.shape_cast %23 : vector<1x1280xf32> to vector<1280xf32>
    %25 = vector.shape_cast %24 : vector<1280xf32> to vector<1x1280xf32>
    %26 = vector.broadcast %22 : vector<8x1xf32> to vector<8x1280xf32>
    %27 = vector.broadcast %25 : vector<1x1280xf32> to vector<8x1280xf32>
    %28 = arith.mulf %26, %27 : vector<8x1280xf32>
    %29 = arith.addf %16, %28 : vector<8x1280xf32>
    %c0_9 = arith.constant 0 : index
    %c2048 = arith.constant 2048 : index
    %30 = vector.load %arg1[%c0_9, %c2048] : memref<8x3072xbf16, #tpu.memory_space<vmem>>, vector<8x1024xbf16>
    %31 = arith.extf %30 : vector<8x1024xbf16> to vector<8x1024xf32>
    %cst_10 = arith.constant dense<0.000000e+00> : vector<8xf32>
    %32 = vector.multi_reduction <add>, %31, %cst_10 [1] : vector<8x1024xf32> to vector<8xf32>
    %33 = vector.shape_cast %32 : vector<8xf32> to vector<8x1xf32>
    %cst_11 = arith.constant 9.765625E-4 : f32
    %34 = vector.broadcast %cst_11 : f32 to vector<8x1xf32>
    %35 = arith.mulf %33, %34 : vector<8x1xf32>
    %36 = vector.extract_strided_slice %0 {offsets = [2, 0], sizes = [1, 1280], strides = [1, 1]} : vector<3x1280xf32> to vector<1x1280xf32>
    %37 = vector.shape_cast %36 : vector<1x1280xf32> to vector<1280xf32>
    %38 = vector.shape_cast %37 : vector<1280xf32> to vector<1x1280xf32>
    %39 = vector.broadcast %35 : vector<8x1xf32> to vector<8x1280xf32>
    %40 = vector.broadcast %38 : vector<1x1280xf32> to vector<8x1280xf32>
    %41 = arith.mulf %39, %40 : vector<8x1280xf32>
    %42 = arith.addf %29, %41 : vector<8x1280xf32>
    %cst_12 = arith.constant 0.000000e+00 : f32
    %43 = vector.broadcast %cst_12 : f32 to vector<8x1280xf32>
    %44 = arith.maximumf %42, %43 : vector<8x1280xf32>
    %c0_13 = arith.constant 0 : index
    %c0_14 = arith.constant 0 : index
    %45 = vector.load %arg2[%c0_13, %c0_14] : memref<8x5xf32, #tpu.memory_space<vmem>>, vector<8x5xf32>
    %c0_15 = arith.constant 0 : index
    %c0_16 = arith.constant 0 : index
    %46 = vector.load %arg5[%c0_15, %c0_16] : memref<5x32xf32, #tpu.memory_space<vmem>>, vector<5x32xf32>
    %cst_17 = arith.constant dense<0.000000e+00> : vector<8x32xf32>
    %47 = tpu.matmul %45, %46, %cst_17 {dimension_numbers = #tpu.dot_dimension_numbers<[1], [0], [0], [1], [0, 0, 1, 1], [], []>} : vector<8x5xf32>, vector<5x32xf32>, vector<8x32xf32> -> vector<8x32xf32>
    %c0_18 = arith.constant 0 : index
    %c0_19 = arith.constant 0 : index
    %48 = vector.load %arg6[%c0_18, %c0_19] : memref<1x32xf32, #tpu.memory_space<vmem>>, vector<1x32xf32>
    %49 = vector.broadcast %48 : vector<1x32xf32> to vector<8x32xf32>
    %50 = arith.addf %47, %49 : vector<8x32xf32>
    %cst_20 = arith.constant 0.000000e+00 : f32
    %51 = vector.broadcast %cst_20 : f32 to vector<8x32xf32>
    %52 = arith.maximumf %50, %51 : vector<8x32xf32>
    %c0_21 = arith.constant 0 : index
    %c0_22 = arith.constant 0 : index
    %53 = vector.load %arg7[%c0_21, %c0_22] : memref<32x64xf32, #tpu.memory_space<vmem>>, vector<32x64xf32>
    %cst_23 = arith.constant dense<0.000000e+00> : vector<8x64xf32>
    %54 = tpu.matmul %52, %53, %cst_23 {dimension_numbers = #tpu.dot_dimension_numbers<[1], [0], [0], [1], [0, 0, 1, 1], [], []>} : vector<8x32xf32>, vector<32x64xf32>, vector<8x64xf32> -> vector<8x64xf32>
    %c0_24 = arith.constant 0 : index
    %c0_25 = arith.constant 0 : index
    %55 = vector.load %arg8[%c0_24, %c0_25] : memref<1x64xf32, #tpu.memory_space<vmem>>, vector<1x64xf32>
    %56 = vector.broadcast %55 : vector<1x64xf32> to vector<8x64xf32>
    %57 = arith.addf %54, %56 : vector<8x64xf32>
    %cst_26 = arith.constant 0.000000e+00 : f32
    %58 = vector.broadcast %cst_26 : f32 to vector<8x64xf32>
    %59 = arith.maximumf %57, %58 : vector<8x64xf32>
    %c0_27 = arith.constant 0 : index
    %c0_28 = arith.constant 0 : index
    %60 = vector.load %arg9[%c0_27, %c0_28] : memref<64x32xf32, #tpu.memory_space<vmem>>, vector<64x32xf32>
    %cst_29 = arith.constant dense<0.000000e+00> : vector<8x32xf32>
    %61 = tpu.matmul %59, %60, %cst_29 {dimension_numbers = #tpu.dot_dimension_numbers<[1], [0], [0], [1], [0, 0, 1, 1], [], []>} : vector<8x64xf32>, vector<64x32xf32>, vector<8x32xf32> -> vector<8x32xf32>
    %c0_30 = arith.constant 0 : index
    %c0_31 = arith.constant 0 : index
    %62 = vector.load %arg10[%c0_30, %c0_31] : memref<1x32xf32, #tpu.memory_space<vmem>>, vector<1x32xf32>
    %63 = vector.broadcast %62 : vector<1x32xf32> to vector<8x32xf32>
    %64 = arith.addf %61, %63 : vector<8x32xf32>
    %65 = arith.truncf %44 : vector<8x1280xf32> to vector<8x1280xbf16>
    %c0_32 = arith.constant 0 : index
    %c0_33 = arith.constant 0 : index
    %66 = vector.load %arg11[%c0_32, %c0_33] : memref<1280x256xbf16, #tpu.memory_space<vmem>>, vector<1280x256xbf16>
    %cst_34 = arith.constant dense<0.000000e+00> : vector<8x256xf32>
    %67 = tpu.matmul %65, %66, %cst_34 {dimension_numbers = #tpu.dot_dimension_numbers<[1], [0], [0], [1], [0, 0, 1, 1], [], []>} : vector<8x1280xbf16>, vector<1280x256xbf16>, vector<8x256xf32> -> vector<8x256xf32>
    %68 = arith.truncf %64 : vector<8x32xf32> to vector<8x32xbf16>
    %c0_35 = arith.constant 0 : index
    %c0_36 = arith.constant 0 : index
    %69 = vector.load %arg12[%c0_35, %c0_36] : memref<32x256xbf16, #tpu.memory_space<vmem>>, vector<32x256xbf16>
    %cst_37 = arith.constant dense<0.000000e+00> : vector<8x256xf32>
    %70 = tpu.matmul %68, %69, %cst_37 {dimension_numbers = #tpu.dot_dimension_numbers<[1], [0], [0], [1], [0, 0, 1, 1], [], []>} : vector<8x32xbf16>, vector<32x256xbf16>, vector<8x256xf32> -> vector<8x256xf32>
    %71 = arith.addf %67, %70 : vector<8x256xf32>
    %c0_38 = arith.constant 0 : index
    %c0_39 = arith.constant 0 : index
    %72 = vector.load %arg13[%c0_38, %c0_39] : memref<1x256xf32, #tpu.memory_space<vmem>>, vector<1x256xf32>
    %73 = vector.broadcast %72 : vector<1x256xf32> to vector<8x256xf32>
    %74 = arith.addf %71, %73 : vector<8x256xf32>
    %cst_40 = arith.constant 0.000000e+00 : f32
    %75 = vector.broadcast %cst_40 : f32 to vector<8x256xf32>
    %76 = arith.maximumf %74, %75 : vector<8x256xf32>
    %77 = arith.truncf %76 : vector<8x256xf32> to vector<8x256xbf16>
    %c0_41 = arith.constant 0 : index
    %c0_42 = arith.constant 0 : index
    %78 = vector.load %arg14[%c0_41, %c0_42] : memref<256x128xbf16, #tpu.memory_space<vmem>>, vector<256x128xbf16>
    %cst_43 = arith.constant dense<0.000000e+00> : vector<8x128xf32>
    %79 = tpu.matmul %77, %78, %cst_43 {dimension_numbers = #tpu.dot_dimension_numbers<[1], [0], [0], [1], [0, 0, 1, 1], [], []>} : vector<8x256xbf16>, vector<256x128xbf16>, vector<8x128xf32> -> vector<8x128xf32>
    %c0_44 = arith.constant 0 : index
    %c0_45 = arith.constant 0 : index
    %80 = vector.load %arg15[%c0_44, %c0_45] : memref<1x128xf32, #tpu.memory_space<vmem>>, vector<1x128xf32>
    %81 = vector.broadcast %80 : vector<1x128xf32> to vector<8x128xf32>
    %82 = arith.addf %79, %81 : vector<8x128xf32>
    %cst_46 = arith.constant 0.000000e+00 : f32
    %83 = vector.broadcast %cst_46 : f32 to vector<8x128xf32>
    %84 = arith.maximumf %82, %83 : vector<8x128xf32>
    %85 = arith.truncf %84 : vector<8x128xf32> to vector<8x128xbf16>
    %c0_47 = arith.constant 0 : index
    %c0_48 = arith.constant 0 : index
    %86 = vector.load %arg16[%c0_47, %c0_48] : memref<128x128xbf16, #tpu.memory_space<vmem>>, vector<128x128xbf16>
    %cst_49 = arith.constant dense<0.000000e+00> : vector<8x128xf32>
    %87 = tpu.matmul %85, %86, %cst_49 {dimension_numbers = #tpu.dot_dimension_numbers<[1], [0], [0], [1], [0, 0, 1, 1], [], []>} : vector<8x128xbf16>, vector<128x128xbf16>, vector<8x128xf32> -> vector<8x128xf32>
    %c0_50 = arith.constant 0 : index
    %c0_51 = arith.constant 0 : index
    %88 = vector.load %arg17[%c0_50, %c0_51] : memref<1x128xf32, #tpu.memory_space<vmem>>, vector<1x128xf32>
    %89 = vector.broadcast %88 : vector<1x128xf32> to vector<8x128xf32>
    %90 = arith.addf %87, %89 : vector<8x128xf32>
    %c0_52 = arith.constant 0 : index
    %c0_53 = arith.constant 0 : index
    %91 = vector.load %arg18[%c0_52, %c0_53] : memref<8x128xf32, #tpu.memory_space<vmem>>, vector<8x128xf32>
    tpu.vector_store %arg18[%c0_52, %c0_53], %90 {strides = array<i32>} : memref<8x128xf32, #tpu.memory_space<vmem>>, vector<8x128xf32>,
    return
  }
  func.func @transform_0(%arg0: i32) -> (i32, i32) {
    %c0_i32 = arith.constant 0 : i32
    %c0_i32_0 = arith.constant 0 : i32
    return %arg0, %c0_i32 : i32, i32
  }
  func.func @transform_1(%arg0: i32) -> (i32, i32) {
    %c0_i32 = arith.constant 0 : i32
    %c0_i32_0 = arith.constant 0 : i32
    return %arg0, %c0_i32 : i32, i32
  }
  func.func @transform_2(%arg0: i32) -> (i32, i32) {
    %c0_i32 = arith.constant 0 : i32
    %c0_i32_0 = arith.constant 0 : i32
    %c0_i32_1 = arith.constant 0 : i32
    return %c0_i32, %c0_i32_0 : i32, i32
  }
  func.func @transform_3(%arg0: i32) -> (i32, i32) {
    %c0_i32 = arith.constant 0 : i32
    %c0_i32_0 = arith.constant 0 : i32
    %c0_i32_1 = arith.constant 0 : i32
    return %c0_i32, %c0_i32_0 : i32, i32
  }
  func.func @transform_4(%arg0: i32) -> (i32, i32) {
    %c0_i32 = arith.constant 0 : i32
    %c0_i32_0 = arith.constant 0 : i32
    %c0_i32_1 = arith.constant 0 : i32
    return %c0_i32, %c0_i32_0 : i32, i32
  }
  func.func @transform_5(%arg0: i32) -> (i32, i32) {
    %c0_i32 = arith.constant 0 : i32
    %c0_i32_0 = arith.constant 0 : i32
    %c0_i32_1 = arith.constant 0 : i32
    return %c0_i32, %c0_i32_0 : i32, i32
  }
  func.func @transform_6(%arg0: i32) -> (i32, i32) {
    %c0_i32 = arith.constant 0 : i32
    %c0_i32_0 = arith.constant 0 : i32
    %c0_i32_1 = arith.constant 0 : i32
    return %c0_i32, %c0_i32_0 : i32, i32
  }
  func.func @transform_7(%arg0: i32) -> (i32, i32) {
    %c0_i32 = arith.constant 0 : i32
    %c0_i32_0 = arith.constant 0 : i32
    %c0_i32_1 = arith.constant 0 : i32
    return %c0_i32, %c0_i32_0 : i32, i32
  }
  func.func @transform_8(%arg0: i32) -> (i32, i32) {
    %c0_i32 = arith.constant 0 : i32
    %c0_i32_0 = arith.constant 0 : i32
    %c0_i32_1 = arith.constant 0 : i32
    return %c0_i32, %c0_i32_0 : i32, i32
  }
  func.func @transform_9(%arg0: i32) -> (i32, i32) {
    %c0_i32 = arith.constant 0 : i32
    %c0_i32_0 = arith.constant 0 : i32
    %c0_i32_1 = arith.constant 0 : i32
    return %c0_i32, %c0_i32_0 : i32, i32
  }
  func.func @transform_10(%arg0: i32) -> (i32, i32) {
    %c0_i32 = arith.constant 0 : i32
    %c0_i32_0 = arith.constant 0 : i32
    %c0_i32_1 = arith.constant 0 : i32
    return %c0_i32, %c0_i32_0 : i32, i32
  }
  func.func @transform_11(%arg0: i32) -> (i32, i32) {
    %c0_i32 = arith.constant 0 : i32
    %c0_i32_0 = arith.constant 0 : i32
    %c0_i32_1 = arith.constant 0 : i32
    return %c0_i32, %c0_i32_0 : i32, i32
  }
  func.func @transform_12(%arg0: i32) -> (i32, i32) {
    %c0_i32 = arith.constant 0 : i32
    %c0_i32_0 = arith.constant 0 : i32
    %c0_i32_1 = arith.constant 0 : i32
    return %c0_i32, %c0_i32_0 : i32, i32
  }
  func.func @transform_13(%arg0: i32) -> (i32, i32) {
    %c0_i32 = arith.constant 0 : i32
    %c0_i32_0 = arith.constant 0 : i32
    %c0_i32_1 = arith.constant 0 : i32
    return %c0_i32, %c0_i32_0 : i32, i32
  }
  func.func @transform_14(%arg0: i32) -> (i32, i32) {
    %c0_i32 = arith.constant 0 : i32
    %c0_i32_0 = arith.constant 0 : i32
    %c0_i32_1 = arith.constant 0 : i32
    return %c0_i32, %c0_i32_0 : i32, i32
  }
  func.func @transform_15(%arg0: i32) -> (i32, i32) {
    %c0_i32 = arith.constant 0 : i32
    %c0_i32_0 = arith.constant 0 : i32
    %c0_i32_1 = arith.constant 0 : i32
    return %c0_i32, %c0_i32_0 : i32, i32
  }
  func.func @transform_16(%arg0: i32) -> (i32, i32) {
    %c0_i32 = arith.constant 0 : i32
    %c0_i32_0 = arith.constant 0 : i32
    %c0_i32_1 = arith.constant 0 : i32
    return %c0_i32, %c0_i32_0 : i32, i32
  }
  func.func @transform_17(%arg0: i32) -> (i32, i32) {
    %c0_i32 = arith.constant 0 : i32
    %c0_i32_0 = arith.constant 0 : i32
    return %arg0, %c0_i32 : i32, i32
  }
}

</mosaic_0001>

<llo_original>
// kernel: enhanced_crop_classifier_forward.1
$region0: #{enhanced_crop_classifier_forward.1}
  #allocation0 [shape = 'u32[]', space=smem, size = 0x4, offset = 0x4, fixed_abs, tag = 'smem constant byte address 0x4 - core index']
  #allocation1 [shape = 'u32[144,128]{1,0:T(1,128)}', space=vmem, size = 0x12000, scoped, tag = 'internal scratch']
  %s0 = inlined_call_operand.vmem [shape: bf16[8,3072], index: 0, kind: input, shape index: {}]
  %s1 = inlined_call_operand.vmem [shape: f32[8,5], index: 1, kind: input, shape index: {}]
  %s2 = inlined_call_operand.vmem [shape: f32[3,1280], index: 2, kind: input, shape index: {}]
  %s3 = inlined_call_operand.vmem [shape: f32[1,1280], index: 3, kind: input, shape index: {}]
  %s4 = inlined_call_operand.vmem [shape: f32[5,32], index: 4, kind: input, shape index: {}]
  %s5 = inlined_call_operand.vmem [shape: f32[1,32], index: 5, kind: input, shape index: {}]
  %s6 = inlined_call_operand.vmem [shape: f32[32,64], index: 6, kind: input, shape index: {}]
  %s7 = inlined_call_operand.vmem [shape: f32[1,64], index: 7, kind: input, shape index: {}]
  %s8 = inlined_call_operand.vmem [shape: f32[64,32], index: 8, kind: input, shape index: {}]
  %s9 = inlined_call_operand.vmem [shape: f32[1,32], index: 9, kind: input, shape index: {}]
  %s10 = inlined_call_operand.vmem [shape: bf16[1280,256], index: 10, kind: input, shape index: {}]
  %s11 = inlined_call_operand.vmem [shape: bf16[32,256], index: 11, kind: input, shape index: {}]
  %s12 = inlined_call_operand.vmem [shape: f32[1,256], index: 12, kind: input, shape index: {}]
  %s13 = inlined_call_operand.vmem [shape: bf16[256,128], index: 13, kind: input, shape index: {}]
  %s14 = inlined_call_operand.vmem [shape: f32[1,128], index: 14, kind: input, shape index: {}]
  %s15 = inlined_call_operand.vmem [shape: bf16[128,128], index: 15, kind: input, shape index: {}]
  %s16 = inlined_call_operand.vmem [shape: f32[1,128], index: 16, kind: input, shape index: {}]
  %s17 = inlined_call_operand.vmem [shape: f32[8,128], index: 17, kind: output, shape index: {}]
  %s18 = sld [smem:[#allocation0]]
  $region78: #{enhanced_crop_classifier_forward.1} parent=0
    _
  %s20 = ssub.s32 1, %s18
  %s21 = scalar_select 0, %s20, %s18
  // Predicated region
  $region2: #{enhanced_crop_classifier_forward.1} parent=0 // pred_check
    _
  $region3: #{enhanced_crop_classifier_forward.1} parent=0 // pred_check_branch
    %23 = sbr.rel (0) target = $region5
  $region4: #{enhanced_crop_classifier_forward.1} parent=0 // pred_region
    _
  $region5: #{enhanced_crop_classifier_forward.1} parent=0 // pred_fallthru
    _
  // Predicated region
  $region6: #{enhanced_crop_classifier_forward.1} parent=0 // pred_check
    _
  $region7: #{enhanced_crop_classifier_forward.1} parent=0 // pred_check_branch
    %25 = sbr.rel (0) target = $region9
  $region8: #{enhanced_crop_classifier_forward.1} parent=0 // pred_region
    _
  $region9: #{enhanced_crop_classifier_forward.1} parent=0 // pred_fallthru
    _
  // Predicated region
  $region10: #{enhanced_crop_classifier_forward.1} parent=0 // pred_check
    _
  $region11: #{enhanced_crop_classifier_forward.1} parent=0 // pred_check_branch
    %27 = sbr.rel (0) target = $region13
  $region12: #{enhanced_crop_classifier_forward.1} parent=0 // pred_region
    _
  $region13: #{enhanced_crop_classifier_forward.1} parent=0 // pred_fallthru
    _
  // Predicated region
  $region14: #{enhanced_crop_classifier_forward.1} parent=0 // pred_check
    _
  $region15: #{enhanced_crop_classifier_forward.1} parent=0 // pred_check_branch
    %29 = sbr.rel (0) target = $region17
  $region16: #{enhanced_crop_classifier_forward.1} parent=0 // pred_region
    _
  $region17: #{enhanced_crop_classifier_forward.1} parent=0 // pred_fallthru
    _
  // Predicated region
  $region18: #{enhanced_crop_classifier_forward.1} parent=0 // pred_check
    _
  $region19: #{enhanced_crop_classifier_forward.1} parent=0 // pred_check_branch
    %31 = sbr.rel (0) target = $region21
  $region20: #{enhanced_crop_classifier_forward.1} parent=0 // pred_region
    _
  $region21: #{enhanced_crop_classifier_forward.1} parent=0 // pred_fallthru
    _
  // Predicated region
  $region22: #{enhanced_crop_classifier_forward.1} parent=0 // pred_check
    _
  $region23: #{enhanced_crop_classifier_forward.1} parent=0 // pred_check_branch
    %33 = sbr.rel (0) target = $region25
  $region24: #{enhanced_crop_classifier_forward.1} parent=0 // pred_region
    _
  $region25: #{enhanced_crop_classifier_forward.1} parent=0 // pred_fallthru
    _
  // Predicated region
  $region26: #{enhanced_crop_classifier_forward.1} parent=0 // pred_check
    _
  $region27: #{enhanced_crop_classifier_forward.1} parent=0 // pred_check_branch
    %35 = sbr.rel (0) target = $region29
  $region28: #{enhanced_crop_classifier_forward.1} parent=0 // pred_region
    _
  $region29: #{enhanced_crop_classifier_forward.1} parent=0 // pred_fallthru
    _
  // Predicated region
  $region30: #{enhanced_crop_classifier_forward.1} parent=0 // pred_check
    _
  $region31: #{enhanced_crop_classifier_forward.1} parent=0 // pred_check_branch
    %37 = sbr.rel (0) target = $region33
  $region32: #{enhanced_crop_classifier_forward.1} parent=0 // pred_region
    _
  $region33: #{enhanced_crop_classifier_forward.1} parent=0 // pred_fallthru
    _
  // Predicated region
  $region34: #{enhanced_crop_classifier_forward.1} parent=0 // pred_check
    _
  $region35: #{enhanced_crop_classifier_forward.1} parent=0 // pred_check_branch
    %39 = sbr.rel (0) target = $region37
  $region36: #{enhanced_crop_classifier_forward.1} parent=0 // pred_region
    _
  $region37: #{enhanced_crop_classifier_forward.1} parent=0 // pred_fallthru
    _
  // Predicated region
  $region38: #{enhanced_crop_classifier_forward.1} parent=0 // pred_check
    _
  $region39: #{enhanced_crop_classifier_forward.1} parent=0 // pred_check_branch
    %41 = sbr.rel (0) target = $region41
  $region40: #{enhanced_crop_classifier_forward.1} parent=0 // pred_region
    _
  $region41: #{enhanced_crop_classifier_forward.1} parent=0 // pred_fallthru
    _
  // Predicated region
  $region42: #{enhanced_crop_classifier_forward.1} parent=0 // pred_check
    _
  $region43: #{enhanced_crop_classifier_forward.1} parent=0 // pred_check_branch
    %43 = sbr.rel (0) target = $region45
  $region44: #{enhanced_crop_classifier_forward.1} parent=0 // pred_region
    _
  $region45: #{enhanced_crop_classifier_forward.1} parent=0 // pred_fallthru
    _
  // Predicated region
  $region46: #{enhanced_crop_classifier_forward.1} parent=0 // pred_check
    _
  $region47: #{enhanced_crop_classifier_forward.1} parent=0 // pred_check_branch
    %45 = sbr.rel (0) target = $region49
  $region48: #{enhanced_crop_classifier_forward.1} parent=0 // pred_region
    _
  $region49: #{enhanced_crop_classifier_forward.1} parent=0 // pred_fallthru
    _
  // Predicated region
  $region50: #{enhanced_crop_classifier_forward.1} parent=0 // pred_check
    _
  $region51: #{enhanced_crop_classifier_forward.1} parent=0 // pred_check_branch
    %47 = sbr.rel (0) target = $region53
  $region52: #{enhanced_crop_classifier_forward.1} parent=0 // pred_region
    _
  $region53: #{enhanced_crop_classifier_forward.1} parent=0 // pred_fallthru
    _
  // Predicated region
  $region54: #{enhanced_crop_classifier_forward.1} parent=0 // pred_check
    _
  $region55: #{enhanced_crop_classifier_forward.1} parent=0 // pred_check_branch
    %49 = sbr.rel (0) target = $region57
  $region56: #{enhanced_crop_classifier_forward.1} parent=0 // pred_region
    _
  $region57: #{enhanced_crop_classifier_forward.1} parent=0 // pred_fallthru
    _
  // Predicated region
  $region58: #{enhanced_crop_classifier_forward.1} parent=0 // pred_check
    _
  $region59: #{enhanced_crop_classifier_forward.1} parent=0 // pred_check_branch
    %51 = sbr.rel (0) target = $region61
  $region60: #{enhanced_crop_classifier_forward.1} parent=0 // pred_region
    _
  $region61: #{enhanced_crop_classifier_forward.1} parent=0 // pred_fallthru
    _
  // Predicated region
  $region62: #{enhanced_crop_classifier_forward.1} parent=0 // pred_check
    _
  $region63: #{enhanced_crop_classifier_forward.1} parent=0 // pred_check_branch
    %53 = sbr.rel (0) target = $region65
  $region64: #{enhanced_crop_classifier_forward.1} parent=0 // pred_region
    _
  $region65: #{enhanced_crop_classifier_forward.1} parent=0 // pred_fallthru
    _
  // Predicated region
  $region66: #{enhanced_crop_classifier_forward.1} parent=0 // pred_check
    _
  $region67: #{enhanced_crop_classifier_forward.1} parent=0 // pred_check_branch
    %55 = sbr.rel (0) target = $region69
  $region68: #{enhanced_crop_classifier_forward.1} parent=0 // pred_region
    _
  $region69: #{enhanced_crop_classifier_forward.1} parent=0 // pred_fallthru
    _
  %v57 = vld [vmem:[%s2] sm:$0x77]
  %v58 = vld [vmem:[%s2 + $0x8] sm:$0x77]
  %v59 = vld [vmem:[%s2 + $0x10] sm:$0x77]
  %v60 = vld [vmem:[%s2 + $0x18] sm:$0x77]
  %v61 = vld [vmem:[%s2 + $0x20] sm:$0x77]
  %v62 = vld [vmem:[%s3] sm:$0xff]
  %v63 = vld [vmem:[%s3 + $0x8] sm:$0x3]
  %v66 = vlaneseq
  %v67 = vshrl.u32 %v66, 7
  %v68 = vsub.s32 0, %v67
  %v69 = vrot.slane %v62, %v68
  %v70 = vlaneseq
  %v71 = vshrl.u32 %v70, 7
  %v72 = vsub.s32 1, %v71
  %v73 = vrot.slane %v62, %v72
  %v74 = vlaneseq
  %v75 = vshrl.u32 %v74, 7
  %v76 = vsub.s32 2, %v75
  %v77 = vrot.slane %v62, %v76
  %v78 = vlaneseq
  %v79 = vshrl.u32 %v78, 7
  %v80 = vsub.s32 3, %v79
  %v81 = vrot.slane %v62, %v80
  %v82 = vlaneseq
  %v83 = vshrl.u32 %v82, 7
  %v84 = vsub.s32 4, %v83
  %v85 = vrot.slane %v62, %v84
  %v86 = vlaneseq
  %v87 = vshrl.u32 %v86, 7
  %v88 = vsub.s32 5, %v87
  %v89 = vrot.slane %v62, %v88
  %v90 = vlaneseq
  %v91 = vshrl.u32 %v90, 7
  %v92 = vsub.s32 6, %v91
  %v93 = vrot.slane %v62, %v92
  %v94 = vlaneseq
  %v95 = vshrl.u32 %v94, 7
  %v96 = vsub.s32 7, %v95
  %v97 = vrot.slane %v62, %v96
  %v98 = vlaneseq
  %v99 = vshrl.u32 %v98, 7
  %v100 = vsub.s32 0, %v99
  %v101 = vrot.slane %v63, %v100
  %v102 = vlaneseq
  %v103 = vshrl.u32 %v102, 7
  %v104 = vsub.s32 1, %v103
  %v105 = vrot.slane %v63, %v104
  %v116 = vld [vmem:[%s0] sm:$0xff]
  %v117 = vld [vmem:[%s0 + $0x8] sm:$0xff]
  %v118 = vld [vmem:[%s0 + $0x10] sm:$0xff]
  %v119 = vld [vmem:[%s0 + $0x18] sm:$0xff]
  %v120 = vunpack.c.l.bf16 %v116
  %v121 = vunpack.c.h.bf16 %v116
  %v122 = vunpack.c.l.bf16 %v117
  %v123 = vunpack.c.h.bf16 %v117
  %v124 = vunpack.c.l.bf16 %v118
  %v125 = vunpack.c.h.bf16 %v118
  %v126 = vunpack.c.l.bf16 %v119
  %v127 = vunpack.c.h.bf16 %v119
  %v128 = vadd.f32 %v120, %v121
  %v129 = vadd.f32 %v128, %v122
  %v130 = vadd.f32 %v129, %v123
  %v131 = vadd.f32 %v130, %v124
  %v132 = vadd.f32 %v131, %v125
  %v133 = vadd.f32 %v132, %v126
  %v134 = vadd.f32 %v133, %v127
  %135 = vadd.xlane.f32.xlu0 %v134
  %v136 = vpop.xlane.xlu0 %135
  %v137 = vmul.f32 %v136, 0.0009765625
  %v143 = vlaneseq
  %v144 = vshrl.u32 %v143, 7
  %v145 = vsub.s32 0, %v144
  %v146 = vrot.slane %v57, %v145
  %v147 = vlaneseq
  %v148 = vshrl.u32 %v147, 7
  %v149 = vsub.s32 4, %v148
  %v150 = vrot.slane %v57, %v149
  %v151 = vlaneseq
  %v152 = vshrl.u32 %v151, 7
  %v153 = vsub.s32 0, %v152
  %v154 = vrot.slane %v58, %v153
  %v155 = vlaneseq
  %v156 = vshrl.u32 %v155, 7
  %v157 = vsub.s32 4, %v156
  %v158 = vrot.slane %v58, %v157
  %v159 = vlaneseq
  %v160 = vshrl.u32 %v159, 7
  %v161 = vsub.s32 0, %v160
  %v162 = vrot.slane %v59, %v161
  %v163 = vlaneseq
  %v164 = vshrl.u32 %v163, 7
  %v165 = vsub.s32 4, %v164
  %v166 = vrot.slane %v59, %v165
  %v167 = vlaneseq
  %v168 = vshrl.u32 %v167, 7
  %v169 = vsub.s32 0, %v168
  %v170 = vrot.slane %v60, %v169
  %v171 = vlaneseq
  %v172 = vshrl.u32 %v171, 7
  %v173 = vsub.s32 4, %v172
  %v174 = vrot.slane %v60, %v173
  %v175 = vlaneseq
  %v176 = vshrl.u32 %v175, 7
  %v177 = vsub.s32 0, %v176
  %v178 = vrot.slane %v61, %v177
  %v179 = vlaneseq
  %v180 = vshrl.u32 %v179, 7
  %v181 = vsub.s32 4, %v180
  %v182 = vrot.slane %v61, %v181
  %v193 = vlaneseq
  %v194 = vshrl.u32 %v193, 7
  %v195 = vsub.s32 0, %v194
  %v196 = vrot.slane %v146, %v195
  %v197 = vlaneseq
  %v198 = vshrl.u32 %v197, 7
  %v199 = vsub.s32 0, %v198
  %v200 = vrot.slane %v150, %v199
  %v201 = vlaneseq
  %v202 = vshrl.u32 %v201, 7
  %v203 = vsub.s32 0, %v202
  %v204 = vrot.slane %v154, %v203
  %v205 = vlaneseq
  %v206 = vshrl.u32 %v205, 7
  %v207 = vsub.s32 0, %v206
  %v208 = vrot.slane %v158, %v207
  %v209 = vlaneseq
  %v210 = vshrl.u32 %v209, 7
  %v211 = vsub.s32 0, %v210
  %v212 = vrot.slane %v162, %v211
  %v213 = vlaneseq
  %v214 = vshrl.u32 %v213, 7
  %v215 = vsub.s32 0, %v214
  %v216 = vrot.slane %v166, %v215
  %v217 = vlaneseq
  %v218 = vshrl.u32 %v217, 7
  %v219 = vsub.s32 0, %v218
  %v220 = vrot.slane %v170, %v219
  %v221 = vlaneseq
  %v222 = vshrl.u32 %v221, 7
  %v223 = vsub.s32 0, %v222
  %v224 = vrot.slane %v174, %v223
  %v225 = vlaneseq
  %v226 = vshrl.u32 %v225, 7
  %v227 = vsub.s32 0, %v226
  %v228 = vrot.slane %v178, %v227
  %v229 = vlaneseq
  %v230 = vshrl.u32 %v229, 7
  %v231 = vsub.s32 0, %v230
  %v232 = vrot.slane %v182, %v231
  %v233 = vmul.f32 %v137, %v196
  %v234 = vmul.f32 %v137, %v200
  %v235 = vmul.f32 %v137, %v204
  %v236 = vmul.f32 %v137, %v208
  %v237 = vmul.f32 %v137, %v212
  %v238 = vmul.f32 %v137, %v216
  %v239 = vmul.f32 %v137, %v220
  %v240 = vmul.f32 %v137, %v224
  %v241 = vmul.f32 %v137, %v228
  %v242 = vmul.f32 %v137, %v232
  %v243 = vadd.f32 %v69, %v233
  %v244 = vadd.f32 %v73, %v234
  %v245 = vadd.f32 %v77, %v235
  %v246 = vadd.f32 %v81, %v236
  %v247 = vadd.f32 %v85, %v237
  %v248 = vadd.f32 %v89, %v238
  %v249 = vadd.f32 %v93, %v239
  %v250 = vadd.f32 %v97, %v240
  %v251 = vadd.f32 %v101, %v241
  %v252 = vadd.f32 %v105, %v242
  %v253 = vld [vmem:[%s0 + $0x20] sm:$0xff]
  %v254 = vld [vmem:[%s0 + $0x28] sm:$0xff]
  %v255 = vld [vmem:[%s0 + $0x30] sm:$0xff]
  %v256 = vld [vmem:[%s0 + $0x38] sm:$0xff]
  %v257 = vunpack.c.l.bf16 %v253
  %v258 = vunpack.c.h.bf16 %v253
  %v259 = vunpack.c.l.bf16 %v254
  %v260 = vunpack.c.h.bf16 %v254
  %v261 = vunpack.c.l.bf16 %v255
  %v262 = vunpack.c.h.bf16 %v255
  %v263 = vunpack.c.l.bf16 %v256
  %v264 = vunpack.c.h.bf16 %v256
  %v265 = vadd.f32 %v257, %v258
  %v266 = vadd.f32 %v265, %v259
  %v267 = vadd.f32 %v266, %v260
  %v268 = vadd.f32 %v267, %v261
  %v269 = vadd.f32 %v268, %v262
  %v270 = vadd.f32 %v269, %v263
  %v271 = vadd.f32 %v270, %v264
  %272 = vadd.xlane.f32.xlu0 %v271
  %v273 = vpop.xlane.xlu0 %272
  %v274 = vmul.f32 %v273, 0.0009765625
  %v275 = vlaneseq
  %v276 = vshrl.u32 %v275, 7
  %v277 = vsub.s32 1, %v276
  %v278 = vrot.slane %v57, %v277
  %v279 = vlaneseq
  %v280 = vshrl.u32 %v279, 7
  %v281 = vsub.s32 5, %v280
  %v282 = vrot.slane %v57, %v281
  %v283 = vlaneseq
  %v284 = vshrl.u32 %v283, 7
  %v285 = vsub.s32 1, %v284
  %v286 = vrot.slane %v58, %v285
  %v287 = vlaneseq
  %v288 = vshrl.u32 %v287, 7
  %v289 = vsub.s32 5, %v288
  %v290 = vrot.slane %v58, %v289
  %v291 = vlaneseq
  %v292 = vshrl.u32 %v291, 7
  %v293 = vsub.s32 1, %v292
  %v294 = vrot.slane %v59, %v293
  %v295 = vlaneseq
  %v296 = vshrl.u32 %v295, 7
  %v297 = vsub.s32 5, %v296
  %v298 = vrot.slane %v59, %v297
  %v299 = vlaneseq
  %v300 = vshrl.u32 %v299, 7
  %v301 = vsub.s32 1, %v300
  %v302 = vrot.slane %v60, %v301
  %v303 = vlaneseq
  %v304 = vshrl.u32 %v303, 7
  %v305 = vsub.s32 5, %v304
  %v306 = vrot.slane %v60, %v305
  %v307 = vlaneseq
  %v308 = vshrl.u32 %v307, 7
  %v309 = vsub.s32 1, %v308
  %v310 = vrot.slane %v61, %v309
  %v311 = vlaneseq
  %v312 = vshrl.u32 %v311, 7
  %v313 = vsub.s32 5, %v312
  %v314 = vrot.slane %v61, %v313
  %v325 = vlaneseq
  %v326 = vshrl.u32 %v325, 7
  %v327 = vsub.s32 1, %v326
  %v328 = vrot.slane %v278, %v327
  %v329 = vlaneseq
  %v330 = vshrl.u32 %v329, 7
  %v331 = vsub.s32 1, %v330
  %v332 = vrot.slane %v282, %v331
  %v333 = vlaneseq
  %v334 = vshrl.u32 %v333, 7
  %v335 = vsub.s32 1, %v334
  %v336 = vrot.slane %v286, %v335
  %v337 = vlaneseq
  %v338 = vshrl.u32 %v337, 7
  %v339 = vsub.s32 1, %v338
  %v340 = vrot.slane %v290, %v339
  %v341 = vlaneseq
  %v342 = vshrl.u32 %v341, 7
  %v343 = vsub.s32 1, %v342
  %v344 = vrot.slane %v294, %v343
  %v345 = vlaneseq
  %v346 = vshrl.u32 %v345, 7
  %v347 = vsub.s32 1, %v346
  %v348 = vrot.slane %v298, %v347
  %v349 = vlaneseq
  %v350 = vshrl.u32 %v349, 7
  %v351 = vsub.s32 1, %v350
  %v352 = vrot.slane %v302, %v351
  %v353 = vlaneseq
  %v354 = vshrl.u32 %v353, 7
  %v355 = vsub.s32 1, %v354
  %v356 = vrot.slane %v306, %v355
  %v357 = vlaneseq
  %v358 = vshrl.u32 %v357, 7
  %v359 = vsub.s32 1, %v358
  %v360 = vrot.slane %v310, %v359
  %v361 = vlaneseq
  %v362 = vshrl.u32 %v361, 7
  %v363 = vsub.s32 1, %v362
  %v364 = vrot.slane %v314, %v363
  %v365 = vmul.f32 %v274, %v328
  %v366 = vmul.f32 %v274, %v332
  %v367 = vmul.f32 %v274, %v336
  %v368 = vmul.f32 %v274, %v340
  %v369 = vmul.f32 %v274, %v344
  %v370 = vmul.f32 %v274, %v348
  %v371 = vmul.f32 %v274, %v352
  %v372 = vmul.f32 %v274, %v356
  %v373 = vmul.f32 %v274, %v360
  %v374 = vmul.f32 %v274, %v364
  %v375 = vadd.f32 %v243, %v365
  %v376 = vadd.f32 %v244, %v366
  %v377 = vadd.f32 %v245, %v367
  %v378 = vadd.f32 %v246, %v368
  %v379 = vadd.f32 %v247, %v369
  %v380 = vadd.f32 %v248, %v370
  %v381 = vadd.f32 %v249, %v371
  %v382 = vadd.f32 %v250, %v372
  %v383 = vadd.f32 %v251, %v373
  %v384 = vadd.f32 %v252, %v374
  %v385 = vld [vmem:[%s0 + $0x40] sm:$0xff]
  %v386 = vld [vmem:[%s0 + $0x48] sm:$0xff]
  %v387 = vld [vmem:[%s0 + $0x50] sm:$0xff]
  %v388 = vld [vmem:[%s0 + $0x58] sm:$0xff]
  %v389 = vunpack.c.l.bf16 %v385
  %v390 = vunpack.c.h.bf16 %v385
  %v391 = vunpack.c.l.bf16 %v386
  %v392 = vunpack.c.h.bf16 %v386
  %v393 = vunpack.c.l.bf16 %v387
  %v394 = vunpack.c.h.bf16 %v387
  %v395 = vunpack.c.l.bf16 %v388
  %v396 = vunpack.c.h.bf16 %v388
  %v397 = vadd.f32 %v389, %v390
  %v398 = vadd.f32 %v397, %v391
  %v399 = vadd.f32 %v398, %v392
  %v400 = vadd.f32 %v399, %v393
  %v401 = vadd.f32 %v400, %v394
  %v402 = vadd.f32 %v401, %v395
  %v403 = vadd.f32 %v402, %v396
  %404 = vadd.xlane.f32.xlu0 %v403
  %v405 = vpop.xlane.xlu0 %404
  %v406 = vmul.f32 %v405, 0.0009765625
  %v407 = vlaneseq
  %v408 = vshrl.u32 %v407, 7
  %v409 = vsub.s32 2, %v408
  %v410 = vrot.slane %v57, %v409
  %v411 = vlaneseq
  %v412 = vshrl.u32 %v411, 7
  %v413 = vsub.s32 6, %v412
  %v414 = vrot.slane %v57, %v413
  %v415 = vlaneseq
  %v416 = vshrl.u32 %v415, 7
  %v417 = vsub.s32 2, %v416
  %v418 = vrot.slane %v58, %v417
  %v419 = vlaneseq
  %v420 = vshrl.u32 %v419, 7
  %v421 = vsub.s32 6, %v420
  %v422 = vrot.slane %v58, %v421
  %v423 = vlaneseq
  %v424 = vshrl.u32 %v423, 7
  %v425 = vsub.s32 2, %v424
  %v426 = vrot.slane %v59, %v425
  %v427 = vlaneseq
  %v428 = vshrl.u32 %v427, 7
  %v429 = vsub.s32 6, %v428
  %v430 = vrot.slane %v59, %v429
  %v431 = vlaneseq
  %v432 = vshrl.u32 %v431, 7
  %v433 = vsub.s32 2, %v432
  %v434 = vrot.slane %v60, %v433
  %v435 = vlaneseq
  %v436 = vshrl.u32 %v435, 7
  %v437 = vsub.s32 6, %v436
  %v438 = vrot.slane %v60, %v437
  %v439 = vlaneseq
  %v440 = vshrl.u32 %v439, 7
  %v441 = vsub.s32 2, %v440
  %v442 = vrot.slane %v61, %v441
  %v443 = vlaneseq
  %v444 = vshrl.u32 %v443, 7
  %v445 = vsub.s32 6, %v444
  %v446 = vrot.slane %v61, %v445
  %v457 = vlaneseq
  %v458 = vshrl.u32 %v457, 7
  %v459 = vsub.s32 2, %v458
  %v460 = vrot.slane %v410, %v459
  %v461 = vlaneseq
  %v462 = vshrl.u32 %v461, 7
  %v463 = vsub.s32 2, %v462
  %v464 = vrot.slane %v414, %v463
  %v465 = vlaneseq
  %v466 = vshrl.u32 %v465, 7
  %v467 = vsub.s32 2, %v466
  %v468 = vrot.slane %v418, %v467
  %v469 = vlaneseq
  %v470 = vshrl.u32 %v469, 7
  %v471 = vsub.s32 2, %v470
  %v472 = vrot.slane %v422, %v471
  %v473 = vlaneseq
  %v474 = vshrl.u32 %v473, 7
  %v475 = vsub.s32 2, %v474
  %v476 = vrot.slane %v426, %v475
  %v477 = vlaneseq
  %v478 = vshrl.u32 %v477, 7
  %v479 = vsub.s32 2, %v478
  %v480 = vrot.slane %v430, %v479
  %v481 = vlaneseq
  %v482 = vshrl.u32 %v481, 7
  %v483 = vsub.s32 2, %v482
  %v484 = vrot.slane %v434, %v483
  %v485 = vlaneseq
  %v486 = vshrl.u32 %v485, 7
  %v487 = vsub.s32 2, %v486
  %v488 = vrot.slane %v438, %v487
  %v489 = vlaneseq
  %v490 = vshrl.u32 %v489, 7
  %v491 = vsub.s32 2, %v490
  %v492 = vrot.slane %v442, %v491
  %v493 = vlaneseq
  %v494 = vshrl.u32 %v493, 7
  %v495 = vsub.s32 2, %v494
  %v496 = vrot.slane %v446, %v495
  %v497 = vmul.f32 %v406, %v460
  %v498 = vmul.f32 %v406, %v464
  %v499 = vmul.f32 %v406, %v468
  %v500 = vmul.f32 %v406, %v472
  %v501 = vmul.f32 %v406, %v476
  %v502 = vmul.f32 %v406, %v480
  %v503 = vmul.f32 %v406, %v484
  %v504 = vmul.f32 %v406, %v488
  %v505 = vmul.f32 %v406, %v492
  %v506 = vmul.f32 %v406, %v496
  %v507 = vadd.f32 %v375, %v497
  %v508 = vadd.f32 %v376, %v498
  %v509 = vadd.f32 %v377, %v499
  %v510 = vadd.f32 %v378, %v500
  %v511 = vadd.f32 %v379, %v501
  %v512 = vadd.f32 %v380, %v502
  %v513 = vadd.f32 %v381, %v503
  %v514 = vadd.f32 %v382, %v504
  %v515 = vadd.f32 %v383, %v505
  %v516 = vadd.f32 %v384, %v506
  %v517 = vmax.f32 %v507, 0.0
  %v518 = vmax.f32 %v508, 0.0
  %v519 = vmax.f32 %v509, 0.0
  %v520 = vmax.f32 %v510, 0.0
  %v521 = vmax.f32 %v511, 0.0
  %v522 = vmax.f32 %v512, 0.0
  %v523 = vmax.f32 %v513, 0.0
  %v524 = vmax.f32 %v514, 0.0
  %v525 = vmax.f32 %v515, 0.0
  %v526 = vmax.f32 %v516, 0.0
  %v527 = vld [vmem:[%s1] sm:$0xff]
  %v528 = vld [vmem:[%s4] sm:$0x1f]
  %v529 = vld [vmem:[%s5] sm:$0x1]
  %v531 = vlaneseq
  %v532 = vshrl.u32 %v531, 7
  %v533 = vsub.s32 0, %v532
  %v534 = vrot.slane %v529, %v533
  %vm536 = vcmask 39936
  %v538 = vsel %vm536, %v527, 0
  %vm540 = vcmask 1044480
  %v542 = vsel %vm540, %v528, 0
  %544 = vmatprep.subr.mxu0 0.0
  %545 = vmatpush1.msra.mxu0 %v542
  %546 = vmatprep.subr.mxu0 0.0
  %547 = vmatpush1.msra.mxu0 0.0
  %548 = vmatprep.subr.mxu0 0.0
  %549 = vmatpush1.msra.mxu0 0.0
  %550 = vmatprep.subr.mxu0 0.0
  %551 = vmatpush1.msra.mxu0 0.0
  %552 = vmatprep.subr.mxu0 0.0
  %553 = vmatpush1.msra.mxu0 0.0
  %554 = vmatprep.subr.mxu0 0.0
  %555 = vmatpush1.msra.mxu0 0.0
  %556 = vmatprep.subr.mxu0 0.0
  %557 = vmatpush1.msra.mxu0 0.0
  %558 = vmatprep.subr.mxu0 0.0
  %559 = vmatpush1.msra.mxu0 0.0
  %560 = vmatprep.subr.mxu0 0.0
  %561 = vmatpush1.msra.mxu0 0.0
  %562 = vmatprep.subr.mxu0 0.0
  %563 = vmatpush1.msra.mxu0 0.0
  %564 = vmatprep.subr.mxu0 0.0
  %565 = vmatpush1.msra.mxu0 0.0
  %566 = vmatprep.subr.mxu0 0.0
  %567 = vmatpush1.msra.mxu0 0.0
  %568 = vmatprep.subr.mxu0 0.0
  %569 = vmatpush1.msra.mxu0 0.0
  %570 = vmatprep.subr.mxu0 0.0
  %571 = vmatpush1.msra.mxu0 0.0
  %572 = vmatprep.subr.mxu0 0.0
  %573 = vmatpush1.msra.mxu0 0.0
  %574 = vmatprep.subr.mxu0 0.0
  %575 = vmatpush1.msra.mxu0 0.0
  %576 = vmatprep.subr.mxu0 0.0
  %577 = vmatpush1.msra.mxu0 0.0
  %578 = vmatprep.subr.mxu0 0.0
  %579 = vmatpush1.msra.mxu0 0.0
  %580 = vmatprep.subr.mxu0 0.0
  %581 = vmatpush1.msra.mxu0 0.0
  %582 = vmatprep.subr.mxu0 0.0
  %583 = vmatpush1.msra.mxu0 0.0
  %584 = vmatprep.subr.mxu0 0.0
  %585 = vmatpush1.msra.mxu0 0.0
  %586 = vmatprep.subr.mxu0 0.0
  %587 = vmatpush1.msra.mxu0 0.0
  %588 = vmatprep.subr.mxu0 0.0
  %589 = vmatpush1.msra.mxu0 0.0
  %590 = vmatprep.subr.mxu0 0.0
  %591 = vmatpush1.msra.mxu0 0.0
  %592 = vmatprep.subr.mxu0 0.0
  %593 = vmatpush1.msra.mxu0 0.0
  %594 = vmatprep.subr.mxu0 0.0
  %595 = vmatpush1.msra.mxu0 0.0
  %596 = vmatprep.subr.mxu0 0.0
  %597 = vmatpush1.msra.mxu0 0.0
  %598 = vmatprep.subr.mxu0 0.0
  %599 = vmatpush1.msra.mxu0 0.0
  %600 = vmatprep.subr.mxu0 0.0
  %601 = vmatpush1.msra.mxu0 0.0
  %602 = vmatprep.subr.mxu0 0.0
  %603 = vmatpush1.msra.mxu0 0.0
  %604 = vmatprep.subr.mxu0 0.0
  %605 = vmatpush1.msra.mxu0 0.0
  %606 = vmatprep.subr.mxu0 0.0
  %607 = vmatpush1.msra.mxu0 0.0
  %608 = vmatprep.mubr.f32.mxu0 0.0
  %609 = vmatmul.mubr.f32.gmra.mrb[0].mxu0 %v538
  %v610 = vpop.f32.mrb[0].mxu0
  %v611 = vadd.f32 %v534, %v610
  %v612 = vpop.f32.mrb[0].mxu0
  %613 = vdwg.mxu0
  %v614 = vmax.f32 %v611, 0.0
  %v615 = vld [vmem:[%s6] sm:$0xff]
  %v616 = vld [vmem:[%s6 + $0x8] sm:$0xff]
  %v617 = vld [vmem:[%s6 + $0x10] sm:$0xff]
  %v618 = vld [vmem:[%s6 + $0x18] sm:$0xff]
  %v619 = vld [vmem:[%s7] sm:$0x1]
  %v621 = vlaneseq
  %v622 = vshrl.u32 %v621, 7
  %v623 = vsub.s32 0, %v622
  %v624 = vrot.slane %v619, %v623
  %vm626 = vcmask 261120
  %v628 = vsel %vm626, %v614, 0
  %630 = vmatprep.subr.mxu0 0.0
  %631 = vmatpush1.msra.mxu0 %v615
  %632 = vmatprep.subr.mxu0 0.0
  %633 = vmatpush1.msra.mxu0 %v616
  %634 = vmatprep.subr.mxu0 0.0
  %635 = vmatpush1.msra.mxu0 %v617
  %636 = vmatprep.subr.mxu0 0.0
  %637 = vmatpush1.msra.mxu0 %v618
  %638 = vmatprep.subr.mxu0 0.0
  %639 = vmatpush1.msra.mxu0 0.0
  %640 = vmatprep.subr.mxu0 0.0
  %641 = vmatpush1.msra.mxu0 0.0
  %642 = vmatprep.subr.mxu0 0.0
  %643 = vmatpush1.msra.mxu0 0.0
  %644 = vmatprep.subr.mxu0 0.0
  %645 = vmatpush1.msra.mxu0 0.0
  %646 = vmatprep.subr.mxu0 0.0
  %647 = vmatpush1.msra.mxu0 0.0
  %648 = vmatprep.subr.mxu0 0.0
  %649 = vmatpush1.msra.mxu0 0.0
  %650 = vmatprep.subr.mxu0 0.0
  %651 = vmatpush1.msra.mxu0 0.0
  %652 = vmatprep.subr.mxu0 0.0
  %653 = vmatpush1.msra.mxu0 0.0
  %654 = vmatprep.subr.mxu0 0.0
  %655 = vmatpush1.msra.mxu0 0.0
  %656 = vmatprep.subr.mxu0 0.0
  %657 = vmatpush1.msra.mxu0 0.0
  %658 = vmatprep.subr.mxu0 0.0
  %659 = vmatpush1.msra.mxu0 0.0
  %660 = vmatprep.subr.mxu0 0.0
  %661 = vmatpush1.msra.mxu0 0.0
  %662 = vmatprep.subr.mxu0 0.0
  %663 = vmatpush1.msra.mxu0 0.0
  %664 = vmatprep.subr.mxu0 0.0
  %665 = vmatpush1.msra.mxu0 0.0
  %666 = vmatprep.subr.mxu0 0.0
  %667 = vmatpush1.msra.mxu0 0.0
  %668 = vmatprep.subr.mxu0 0.0
  %669 = vmatpush1.msra.mxu0 0.0
  %670 = vmatprep.subr.mxu0 0.0
  %671 = vmatpush1.msra.mxu0 0.0
  %672 = vmatprep.subr.mxu0 0.0
  %673 = vmatpush1.msra.mxu0 0.0
  %674 = vmatprep.subr.mxu0 0.0
  %675 = vmatpush1.msra.mxu0 0.0
  %676 = vmatprep.subr.mxu0 0.0
  %677 = vmatpush1.msra.mxu0 0.0
  %678 = vmatprep.subr.mxu0 0.0
  %679 = vmatpush1.msra.mxu0 0.0
  %680 = vmatprep.subr.mxu0 0.0
  %681 = vmatpush1.msra.mxu0 0.0
  %682 = vmatprep.subr.mxu0 0.0
  %683 = vmatpush1.msra.mxu0 0.0
  %684 = vmatprep.subr.mxu0 0.0
  %685 = vmatpush1.msra.mxu0 0.0
  %686 = vmatprep.subr.mxu0 0.0
  %687 = vmatpush1.msra.mxu0 0.0
  %688 = vmatprep.subr.mxu0 0.0
  %689 = vmatpush1.msra.mxu0 0.0
  %690 = vmatprep.subr.mxu0 0.0
  %691 = vmatpush1.msra.mxu0 0.0
  %692 = vmatprep.subr.mxu0 0.0
  %693 = vmatpush1.msra.mxu0 0.0
  %694 = vmatprep.mubr.f32.mxu0 0.0
  %695 = vmatmul.mubr.f32.gmra.mrb[0].mxu0 %v628
  %v696 = vpop.f32.mrb[0].mxu0
  %v697 = vadd.f32 %v624, %v696
  %v698 = vpop.f32.mrb[0].mxu0
  %699 = vdwg.mxu0
  %v700 = vmax.f32 %v697, 0.0
  %v701 = vld [vmem:[%s8] sm:$0xff]
  %v702 = vld [vmem:[%s8 + $0x8] sm:$0xff]
  %v703 = vld [vmem:[%s8 + $0x10] sm:$0xff]
  %v704 = vld [vmem:[%s8 + $0x18] sm:$0xff]
  %v705 = vld [vmem:[%s8 + $0x20] sm:$0xff]
  %v706 = vld [vmem:[%s8 + $0x28] sm:$0xff]
  %v707 = vld [vmem:[%s8 + $0x30] sm:$0xff]
  %v708 = vld [vmem:[%s8 + $0x38] sm:$0xff]
  %v709 = vld [vmem:[%s9] sm:$0x1]
  %v711 = vlaneseq
  %v712 = vshrl.u32 %v711, 7
  %v713 = vsub.s32 0, %v712
  %v714 = vrot.slane %v709, %v713
  %vm716 = vcmask 523264
  %v718 = vsel %vm716, %v700, 0
  %720 = vmatprep.subr.mxu0 0.0
  %721 = vmatpush1.msra.mxu0 %v701
  %722 = vmatprep.subr.mxu0 0.0
  %723 = vmatpush1.msra.mxu0 %v702
  %724 = vmatprep.subr.mxu0 0.0
  %725 = vmatpush1.msra.mxu0 %v703
  %726 = vmatprep.subr.mxu0 0.0
  %727 = vmatpush1.msra.mxu0 %v704
  %728 = vmatprep.subr.mxu0 0.0
  %729 = vmatpush1.msra.mxu0 %v705
  %730 = vmatprep.subr.mxu0 0.0
  %731 = vmatpush1.msra.mxu0 %v706
  %732 = vmatprep.subr.mxu0 0.0
  %733 = vmatpush1.msra.mxu0 %v707
  %734 = vmatprep.subr.mxu0 0.0
  %735 = vmatpush1.msra.mxu0 %v708
  %736 = vmatprep.subr.mxu0 0.0
  %737 = vmatpush1.msra.mxu0 0.0
  %738 = vmatprep.subr.mxu0 0.0
  %739 = vmatpush1.msra.mxu0 0.0
  %740 = vmatprep.subr.mxu0 0.0
  %741 = vmatpush1.msra.mxu0 0.0
  %742 = vmatprep.subr.mxu0 0.0
  %743 = vmatpush1.msra.mxu0 0.0
  %744 = vmatprep.subr.mxu0 0.0
  %745 = vmatpush1.msra.mxu0 0.0
  %746 = vmatprep.subr.mxu0 0.0
  %747 = vmatpush1.msra.mxu0 0.0
  %748 = vmatprep.subr.mxu0 0.0
  %749 = vmatpush1.msra.mxu0 0.0
  %750 = vmatprep.subr.mxu0 0.0
  %751 = vmatpush1.msra.mxu0 0.0
  %752 = vmatprep.subr.mxu0 0.0
  %753 = vmatpush1.msra.mxu0 0.0
  %754 = vmatprep.subr.mxu0 0.0
  %755 = vmatpush1.msra.mxu0 0.0
  %756 = vmatprep.subr.mxu0 0.0
  %757 = vmatpush1.msra.mxu0 0.0
  %758 = vmatprep.subr.mxu0 0.0
  %759 = vmatpush1.msra.mxu0 0.0
  %760 = vmatprep.subr.mxu0 0.0
  %761 = vmatpush1.msra.mxu0 0.0
  %762 = vmatprep.subr.mxu0 0.0
  %763 = vmatpush1.msra.mxu0 0.0
  %764 = vmatprep.subr.mxu0 0.0
  %765 = vmatpush1.msra.mxu0 0.0
  %766 = vmatprep.subr.mxu0 0.0
  %767 = vmatpush1.msra.mxu0 0.0
  %768 = vmatprep.subr.mxu0 0.0
  %769 = vmatpush1.msra.mxu0 0.0
  %770 = vmatprep.subr.mxu0 0.0
  %771 = vmatpush1.msra.mxu0 0.0
  %772 = vmatprep.subr.mxu0 0.0
  %773 = vmatpush1.msra.mxu0 0.0
  %774 = vmatprep.subr.mxu0 0.0
  %775 = vmatpush1.msra.mxu0 0.0
  %776 = vmatprep.subr.mxu0 0.0
  %777 = vmatpush1.msra.mxu0 0.0
  %778 = vmatprep.subr.mxu0 0.0
  %779 = vmatpush1.msra.mxu0 0.0
  %780 = vmatprep.subr.mxu0 0.0
  %781 = vmatpush1.msra.mxu0 0.0
  %782 = vmatprep.subr.mxu0 0.0
  %783 = vmatpush1.msra.mxu0 0.0
  %784 = vmatprep.mubr.f32.mxu0 0.0
  %785 = vmatmul.mubr.f32.gmra.mrb[0].mxu0 %v718
  %v786 = vpop.f32.mrb[0].mxu0
  %v787 = vadd.f32 %v714, %v786
  %v788 = vpop.f32.mrb[0].mxu0
  %789 = vdwg.mxu0
  %v790 = vpack.c.bf16 %v517, %v517
  %v791 = vpack.c.bf16 %v518, %v518
  %v792 = vpack.c.bf16 %v519, %v519
  %v793 = vpack.c.bf16 %v520, %v520
  %v794 = vpack.c.bf16 %v521, %v521
  %v795 = vpack.c.bf16 %v522, %v522
  %v796 = vpack.c.bf16 %v523, %v523
  %v797 = vpack.c.bf16 %v524, %v524
  %v798 = vpack.c.bf16 %v525, %v525
  %v799 = vpack.c.bf16 %v526, %v526
  %v800 = vld [vmem:[%s10] sm:$0xff]
  %v801 = vld [vmem:[%s10 + $0x8] sm:$0xff]
  %v802 = vld [vmem:[%s10 + $0x10] sm:$0xff]
  %v803 = vld [vmem:[%s10 + $0x18] sm:$0xff]
  %v804 = vld [vmem:[%s10 + $0x20] sm:$0xff]
  %v805 = vld [vmem:[%s10 + $0x28] sm:$0xff]
  %v806 = vld [vmem:[%s10 + $0x30] sm:$0xff]
  %v807 = vld [vmem:[%s10 + $0x38] sm:$0xff]
  %v808 = vld [vmem:[%s10 + $0x40] sm:$0xff]
  %v809 = vld [vmem:[%s10 + $0x48] sm:$0xff]
  %v810 = vld [vmem:[%s10 + $0x50] sm:$0xff]
  %v811 = vld [vmem:[%s10 + $0x58] sm:$0xff]
  %v812 = vld [vmem:[%s10 + $0x60] sm:$0xff]
  %v813 = vld [vmem:[%s10 + $0x68] sm:$0xff]
  %v814 = vld [vmem:[%s10 + $0x70] sm:$0xff]
  %v815 = vld [vmem:[%s10 + $0x78] sm:$0xff]
  %v816 = vld [vmem:[%s10 + $0x80] sm:$0xff]
  %v817 = vld [vmem:[%s10 + $0x88] sm:$0xff]
  %v818 = vld [vmem:[%s10 + $0x90] sm:$0xff]
  %v819 = vld [vmem:[%s10 + $0x98] sm:$0xff]
  %v820 = vld [vmem:[%s10 + $0xa0] sm:$0xff]
  %v821 = vld [vmem:[%s10 + $0xa8] sm:$0xff]
  %v822 = vld [vmem:[%s10 + $0xb0] sm:$0xff]
  %v823 = vld [vmem:[%s10 + $0xb8] sm:$0xff]
  %v824 = vld [vmem:[%s10 + $0xc0] sm:$0xff]
  %v825 = vld [vmem:[%s10 + $0xc8] sm:$0xff]
  %v826 = vld [vmem:[%s10 + $0xd0] sm:$0xff]
  %v827 = vld [vmem:[%s10 + $0xd8] sm:$0xff]
  %v828 = vld [vmem:[%s10 + $0xe0] sm:$0xff]
  %v829 = vld [vmem:[%s10 + $0xe8] sm:$0xff]
  %v830 = vld [vmem:[%s10 + $0xf0] sm:$0xff]
  %v831 = vld [vmem:[%s10 + $0xf8] sm:$0xff]
  %v832 = vld [vmem:[%s10 + $0x100] sm:$0xff]
  %v833 = vld [vmem:[%s10 + $0x108] sm:$0xff]
  %v834 = vld [vmem:[%s10 + $0x110] sm:$0xff]
  %v835 = vld [vmem:[%s10 + $0x118] sm:$0xff]
  %v836 = vld [vmem:[%s10 + $0x120] sm:$0xff]
  %v837 = vld [vmem:[%s10 + $0x128] sm:$0xff]
  %v838 = vld [vmem:[%s10 + $0x130] sm:$0xff]
  %v839 = vld [vmem:[%s10 + $0x138] sm:$0xff]
  %v840 = vld [vmem:[%s10 + $0x140] sm:$0xff]
  %v841 = vld [vmem:[%s10 + $0x148] sm:$0xff]
  %v842 = vld [vmem:[%s10 + $0x150] sm:$0xff]
  %v843 = vld [vmem:[%s10 + $0x158] sm:$0xff]
  %v844 = vld [vmem:[%s10 + $0x160] sm:$0xff]
  %v845 = vld [vmem:[%s10 + $0x168] sm:$0xff]
  %v846 = vld [vmem:[%s10 + $0x170] sm:$0xff]
  %v847 = vld [vmem:[%s10 + $0x178] sm:$0xff]
  %v848 = vld [vmem:[%s10 + $0x180] sm:$0xff]
  %v849 = vld [vmem:[%s10 + $0x188] sm:$0xff]
  %v850 = vld [vmem:[%s10 + $0x190] sm:$0xff]
  %v851 = vld [vmem:[%s10 + $0x198] sm:$0xff]
  %v852 = vld [vmem:[%s10 + $0x1a0] sm:$0xff]
  %v853 = vld [vmem:[%s10 + $0x1a8] sm:$0xff]
  %v854 = vld [vmem:[%s10 + $0x1b0] sm:$0xff]
  %v855 = vld [vmem:[%s10 + $0x1b8] sm:$0xff]
  %v856 = vld [vmem:[%s10 + $0x1c0] sm:$0xff]
  %v857 = vld [vmem:[%s10 + $0x1c8] sm:$0xff]
  %v858 = vld [vmem:[%s10 + $0x1d0] sm:$0xff]
  %v859 = vld [vmem:[%s10 + $0x1d8] sm:$0xff]
  %v860 = vld [vmem:[%s10 + $0x1e0] sm:$0xff]
  %v861 = vld [vmem:[%s10 + $0x1e8] sm:$0xff]
  %v862 = vld [vmem:[%s10 + $0x1f0] sm:$0xff]
  %v863 = vld [vmem:[%s10 + $0x1f8] sm:$0xff]
  %v864 = vld [vmem:[%s10 + $0x200] sm:$0xff]
  %v865 = vld [vmem:[%s10 + $0x208] sm:$0xff]
  %v866 = vld [vmem:[%s10 + $0x210] sm:$0xff]
  %v867 = vld [vmem:[%s10 + $0x218] sm:$0xff]
  %v868 = vld [vmem:[%s10 + $0x220] sm:$0xff]
  %v869 = vld [vmem:[%s10 + $0x228] sm:$0xff]
  %v870 = vld [vmem:[%s10 + $0x230] sm:$0xff]
  %v871 = vld [vmem:[%s10 + $0x238] sm:$0xff]
  %v872 = vld [vmem:[%s10 + $0x240] sm:$0xff]
  %v873 = vld [vmem:[%s10 + $0x248] sm:$0xff]
  %v874 = vld [vmem:[%s10 + $0x250] sm:$0xff]
  %v875 = vld [vmem:[%s10 + $0x258] sm:$0xff]
  %v876 = vld [vmem:[%s10 + $0x260] sm:$0xff]
  %v877 = vld [vmem:[%s10 + $0x268] sm:$0xff]
  %v878 = vld [vmem:[%s10 + $0x270] sm:$0xff]
  %v879 = vld [vmem:[%s10 + $0x278] sm:$0xff]
  %v880 = vld [vmem:[%s10 + $0x280] sm:$0xff]
  %v881 = vld [vmem:[%s10 + $0x288] sm:$0xff]
  %v882 = vld [vmem:[%s10 + $0x290] sm:$0xff]
  %v883 = vld [vmem:[%s10 + $0x298] sm:$0xff]
  %v884 = vld [vmem:[%s10 + $0x2a0] sm:$0xff]
  %v885 = vld [vmem:[%s10 + $0x2a8] sm:$0xff]
  %v886 = vld [vmem:[%s10 + $0x2b0] sm:$0xff]
  %v887 = vld [vmem:[%s10 + $0x2b8] sm:$0xff]
  %v888 = vld [vmem:[%s10 + $0x2c0] sm:$0xff]
  %v889 = vld [vmem:[%s10 + $0x2c8] sm:$0xff]
  %v890 = vld [vmem:[%s10 + $0x2d0] sm:$0xff]
  %v891 = vld [vmem:[%s10 + $0x2d8] sm:$0xff]
  %v892 = vld [vmem:[%s10 + $0x2e0] sm:$0xff]
  %v893 = vld [vmem:[%s10 + $0x2e8] sm:$0xff]
  %v894 = vld [vmem:[%s10 + $0x2f0] sm:$0xff]
  %v895 = vld [vmem:[%s10 + $0x2f8] sm:$0xff]
  %v896 = vld [vmem:[%s10 + $0x300] sm:$0xff]
  %v897 = vld [vmem:[%s10 + $0x308] sm:$0xff]
  %v898 = vld [vmem:[%s10 + $0x310] sm:$0xff]
  %v899 = vld [vmem:[%s10 + $0x318] sm:$0xff]
  %v900 = vld [vmem:[%s10 + $0x320] sm:$0xff]
  %v901 = vld [vmem:[%s10 + $0x328] sm:$0xff]
  %v902 = vld [vmem:[%s10 + $0x330] sm:$0xff]
  %v903 = vld [vmem:[%s10 + $0x338] sm:$0xff]
  %v904 = vld [vmem:[%s10 + $0x340] sm:$0xff]
  %v905 = vld [vmem:[%s10 + $0x348] sm:$0xff]
  %v906 = vld [vmem:[%s10 + $0x350] sm:$0xff]
  %v907 = vld [vmem:[%s10 + $0x358] sm:$0xff]
  %v908 = vld [vmem:[%s10 + $0x360] sm:$0xff]
  %v909 = vld [vmem:[%s10 + $0x368] sm:$0xff]
  %v910 = vld [vmem:[%s10 + $0x370] sm:$0xff]
  %v911 = vld [vmem:[%s10 + $0x378] sm:$0xff]
  %v912 = vld [vmem:[%s10 + $0x380] sm:$0xff]
  %v913 = vld [vmem:[%s10 + $0x388] sm:$0xff]
  %v914 = vld [vmem:[%s10 + $0x390] sm:$0xff]
  %v915 = vld [vmem:[%s10 + $0x398] sm:$0xff]
  %v916 = vld [vmem:[%s10 + $0x3a0] sm:$0xff]
  %v917 = vld [vmem:[%s10 + $0x3a8] sm:$0xff]
  %v918 = vld [vmem:[%s10 + $0x3b0] sm:$0xff]
  %v919 = vld [vmem:[%s10 + $0x3b8] sm:$0xff]
  %v920 = vld [vmem:[%s10 + $0x3c0] sm:$0xff]
  %v921 = vld [vmem:[%s10 + $0x3c8] sm:$0xff]
  %v922 = vld [vmem:[%s10 + $0x3d0] sm:$0xff]
  %v923 = vld [vmem:[%s10 + $0x3d8] sm:$0xff]
  %v924 = vld [vmem:[%s10 + $0x3e0] sm:$0xff]
  %v925 = vld [vmem:[%s10 + $0x3e8] sm:$0xff]
  %v926 = vld [vmem:[%s10 + $0x3f0] sm:$0xff]
  %v927 = vld [vmem:[%s10 + $0x3f8] sm:$0xff]
  %v928 = vld [vmem:[%s10 + $0x400] sm:$0xff]
  %v929 = vld [vmem:[%s10 + $0x408] sm:$0xff]
  %v930 = vld [vmem:[%s10 + $0x410] sm:$0xff]
  %v931 = vld [vmem:[%s10 + $0x418] sm:$0xff]
  %v932 = vld [vmem:[%s10 + $0x420] sm:$0xff]
  %v933 = vld [vmem:[%s10 + $0x428] sm:$0xff]
  %v934 = vld [vmem:[%s10 + $0x430] sm:$0xff]
  %v935 = vld [vmem:[%s10 + $0x438] sm:$0xff]
  %v936 = vld [vmem:[%s10 + $0x440] sm:$0xff]
  %v937 = vld [vmem:[%s10 + $0x448] sm:$0xff]
  %v938 = vld [vmem:[%s10 + $0x450] sm:$0xff]
  %v939 = vld [vmem:[%s10 + $0x458] sm:$0xff]
  %v940 = vld [vmem:[%s10 + $0x460] sm:$0xff]
  %v941 = vld [vmem:[%s10 + $0x468] sm:$0xff]
  %v942 = vld [vmem:[%s10 + $0x470] sm:$0xff]
  %v943 = vld [vmem:[%s10 + $0x478] sm:$0xff]
  %v944 = vld [vmem:[%s10 + $0x480] sm:$0xff]
  %v945 = vld [vmem:[%s10 + $0x488] sm:$0xff]
  %v946 = vld [vmem:[%s10 + $0x490] sm:$0xff]
  %v947 = vld [vmem:[%s10 + $0x498] sm:$0xff]
  %v948 = vld [vmem:[%s10 + $0x4a0] sm:$0xff]
  %v949 = vld [vmem:[%s10 + $0x4a8] sm:$0xff]
  %v950 = vld [vmem:[%s10 + $0x4b0] sm:$0xff]
  %v951 = vld [vmem:[%s10 + $0x4b8] sm:$0xff]
  %v952 = vld [vmem:[%s10 + $0x4c0] sm:$0xff]
  %v953 = vld [vmem:[%s10 + $0x4c8] sm:$0xff]
  %v954 = vld [vmem:[%s10 + $0x4d0] sm:$0xff]
  %v955 = vld [vmem:[%s10 + $0x4d8] sm:$0xff]
  %v956 = vld [vmem:[%s10 + $0x4e0] sm:$0xff]
  %v957 = vld [vmem:[%s10 + $0x4e8] sm:$0xff]
  %v958 = vld [vmem:[%s10 + $0x4f0] sm:$0xff]
  %v959 = vld [vmem:[%s10 + $0x4f8] sm:$0xff]
  %v960 = vpack.c.bf16 %v787, %v787
  %v961 = vld [vmem:[%s11] sm:$0xff]
  %v962 = vld [vmem:[%s11 + $0x8] sm:$0xff]
  %v963 = vld [vmem:[%s11 + $0x10] sm:$0xff]
  %v964 = vld [vmem:[%s11 + $0x18] sm:$0xff]
  %v969 = vunpack.c.l.b16 %v961
  %v970 = vunpack.c.h.b16 %v961
  %v971 = vunpack.c.l.b16 %v962
  %v972 = vunpack.c.h.b16 %v962
  %v973 = vunpack.c.l.b16 %v963
  %v974 = vunpack.c.h.b16 %v963
  %v975 = vunpack.c.l.b16 %v964
  %v976 = vunpack.c.h.b16 %v964
  %v977 = vpack.c.b16 %v971, %v969
  %v978 = vpack.c.b16 %v972, %v970
  %v979 = vpack.c.b16 %v975, %v973
  %v980 = vpack.c.b16 %v976, %v974
  %v986 = vsel %vm626, %v960, 0
  %988 = vmatprep.subr.bf16.mxu0 %v978
  %989 = vmatpush1.bf16.msra.mxu0 %v977
  %990 = vmatprep.subr.bf16.mxu0 %v980
  %991 = vmatpush1.bf16.msra.mxu0 %v979
  %992 = vmatprep.subr.bf16.mxu0 0
  %993 = vmatpush1.bf16.msra.mxu0 0
  %994 = vmatprep.subr.bf16.mxu0 0
  %995 = vmatpush1.bf16.msra.mxu0 0
  %996 = vmatprep.subr.bf16.mxu0 0
  %997 = vmatpush1.bf16.msra.mxu0 0
  %998 = vmatprep.subr.bf16.mxu0 0
  %999 = vmatpush1.bf16.msra.mxu0 0
  %1000 = vmatprep.subr.bf16.mxu0 0
  %1001 = vmatpush1.bf16.msra.mxu0 0
  %1002 = vmatprep.subr.bf16.mxu0 0
  %1003 = vmatpush1.bf16.msra.mxu0 0
  %1004 = vmatprep.subr.bf16.mxu0 0
  %1005 = vmatpush1.bf16.msra.mxu0 0
  %1006 = vmatprep.subr.bf16.mxu0 0
  %1007 = vmatpush1.bf16.msra.mxu0 0
  %1008 = vmatprep.subr.bf16.mxu0 0
  %1009 = vmatpush1.bf16.msra.mxu0 0
  %1010 = vmatprep.subr.bf16.mxu0 0
  %1011 = vmatpush1.bf16.msra.mxu0 0
  %1012 = vmatprep.subr.bf16.mxu0 0
  %1013 = vmatpush1.bf16.msra.mxu0 0
  %1014 = vmatprep.subr.bf16.mxu0 0
  %1015 = vmatpush1.bf16.msra.mxu0 0
  %1016 = vmatprep.subr.bf16.mxu0 0
  %1017 = vmatpush1.bf16.msra.mxu0 0
  %1018 = vmatprep.subr.bf16.mxu0 0
  %1019 = vmatpush1.bf16.msra.mxu0 0
  %1020 = vmatprep.mubr.bf16.mxu0 0
  %1021 = vmatmul.mubr.bf16.gmra.mrb[0].mxu0 %v986
  %v1022 = vpop.f32.mrb[0].mxu0
  %v1023 = vadd.f32 0.0, %v1022
  %v1024 = vpop.f32.mrb[0].mxu0
  %v1025 = vadd.f32 0.0, %v1024
  %v1026 = vpop.f32.mrb[0].mxu0
  %v1027 = vpop.f32.mrb[0].mxu0
  %1028 = vdwg.mxu0
  %v1189 = vunpack.c.l.b16 %v800
  %v1190 = vunpack.c.h.b16 %v800
  %v1191 = vunpack.c.l.b16 %v801
  %v1192 = vunpack.c.h.b16 %v801
  %v1193 = vunpack.c.l.b16 %v802
  %v1194 = vunpack.c.h.b16 %v802
  %v1195 = vunpack.c.l.b16 %v803
  %v1196 = vunpack.c.h.b16 %v803
  %v1197 = vunpack.c.l.b16 %v804
  %v1198 = vunpack.c.h.b16 %v804
  %v1199 = vunpack.c.l.b16 %v805
  %v1200 = vunpack.c.h.b16 %v805
  %v1201 = vunpack.c.l.b16 %v806
  %v1202 = vunpack.c.h.b16 %v806
  %v1203 = vunpack.c.l.b16 %v807
  %v1204 = vunpack.c.h.b16 %v807
  %v1205 = vunpack.c.l.b16 %v808
  %v1206 = vunpack.c.h.b16 %v808
  %v1207 = vunpack.c.l.b16 %v809
  %v1208 = vunpack.c.h.b16 %v809
  %v1209 = vunpack.c.l.b16 %v810
  %v1210 = vunpack.c.h.b16 %v810
  %v1211 = vunpack.c.l.b16 %v811
  %v1212 = vunpack.c.h.b16 %v811
  %v1213 = vunpack.c.l.b16 %v812
  %v1214 = vunpack.c.h.b16 %v812
  %v1215 = vunpack.c.l.b16 %v813
  %v1216 = vunpack.c.h.b16 %v813
  %v1217 = vunpack.c.l.b16 %v814
  %v1218 = vunpack.c.h.b16 %v814
  %v1219 = vunpack.c.l.b16 %v815
  %v1220 = vunpack.c.h.b16 %v815
  %v1221 = vunpack.c.l.b16 %v816
  %v1222 = vunpack.c.h.b16 %v816
  %v1223 = vunpack.c.l.b16 %v817
  %v1224 = vunpack.c.h.b16 %v817
  %v1225 = vunpack.c.l.b16 %v818
  %v1226 = vunpack.c.h.b16 %v818
  %v1227 = vunpack.c.l.b16 %v819
  %v1228 = vunpack.c.h.b16 %v819
  %v1229 = vunpack.c.l.b16 %v820
  %v1230 = vunpack.c.h.b16 %v820
  %v1231 = vunpack.c.l.b16 %v821
  %v1232 = vunpack.c.h.b16 %v821
  %v1233 = vunpack.c.l.b16 %v822
  %v1234 = vunpack.c.h.b16 %v822
  %v1235 = vunpack.c.l.b16 %v823
  %v1236 = vunpack.c.h.b16 %v823
  %v1237 = vunpack.c.l.b16 %v824
  %v1238 = vunpack.c.h.b16 %v824
  %v1239 = vunpack.c.l.b16 %v825
  %v1240 = vunpack.c.h.b16 %v825
  %v1241 = vunpack.c.l.b16 %v826
  %v1242 = vunpack.c.h.b16 %v826
  %v1243 = vunpack.c.l.b16 %v827
  %v1244 = vunpack.c.h.b16 %v827
  %v1245 = vunpack.c.l.b16 %v828
  %v1246 = vunpack.c.h.b16 %v828
  %v1247 = vunpack.c.l.b16 %v829
  %v1248 = vunpack.c.h.b16 %v829
  %v1249 = vunpack.c.l.b16 %v830
  %v1250 = vunpack.c.h.b16 %v830
  %v1251 = vunpack.c.l.b16 %v831
  %v1252 = vunpack.c.h.b16 %v831
  %v1253 = vunpack.c.l.b16 %v832
  %v1254 = vunpack.c.h.b16 %v832
  %v1255 = vunpack.c.l.b16 %v833
  %v1256 = vunpack.c.h.b16 %v833
  %v1257 = vunpack.c.l.b16 %v834
  %v1258 = vunpack.c.h.b16 %v834
  %v1259 = vunpack.c.l.b16 %v835
  %v1260 = vunpack.c.h.b16 %v835
  %v1261 = vunpack.c.l.b16 %v836
  %v1262 = vunpack.c.h.b16 %v836
  %v1263 = vunpack.c.l.b16 %v837
  %v1264 = vunpack.c.h.b16 %v837
  %v1265 = vunpack.c.l.b16 %v838
  %v1266 = vunpack.c.h.b16 %v838
  %v1267 = vunpack.c.l.b16 %v839
  %v1268 = vunpack.c.h.b16 %v839
  %v1269 = vunpack.c.l.b16 %v840
  %v1270 = vunpack.c.h.b16 %v840
  %v1271 = vunpack.c.l.b16 %v841
  %v1272 = vunpack.c.h.b16 %v841
  %v1273 = vunpack.c.l.b16 %v842
  %v1274 = vunpack.c.h.b16 %v842
  %v1275 = vunpack.c.l.b16 %v843
  %v1276 = vunpack.c.h.b16 %v843
  %v1277 = vunpack.c.l.b16 %v844
  %v1278 = vunpack.c.h.b16 %v844
  %v1279 = vunpack.c.l.b16 %v845
  %v1280 = vunpack.c.h.b16 %v845
  %v1281 = vunpack.c.l.b16 %v846
  %v1282 = vunpack.c.h.b16 %v846
  %v1283 = vunpack.c.l.b16 %v847
  %v1284 = vunpack.c.h.b16 %v847
  %v1285 = vunpack.c.l.b16 %v848
  %v1286 = vunpack.c.h.b16 %v848
  %v1287 = vunpack.c.l.b16 %v849
  %v1288 = vunpack.c.h.b16 %v849
  %v1289 = vunpack.c.l.b16 %v850
  %v1290 = vunpack.c.h.b16 %v850
  %v1291 = vunpack.c.l.b16 %v851
  %v1292 = vunpack.c.h.b16 %v851
  %v1293 = vunpack.c.l.b16 %v852
  %v1294 = vunpack.c.h.b16 %v852
  %v1295 = vunpack.c.l.b16 %v853
  %v1296 = vunpack.c.h.b16 %v853
  %v1297 = vunpack.c.l.b16 %v854
  %v1298 = vunpack.c.h.b16 %v854
  %v1299 = vunpack.c.l.b16 %v855
  %v1300 = vunpack.c.h.b16 %v855
  %v1301 = vunpack.c.l.b16 %v856
  %v1302 = vunpack.c.h.b16 %v856
  %v1303 = vunpack.c.l.b16 %v857
  %v1304 = vunpack.c.h.b16 %v857
  %v1305 = vunpack.c.l.b16 %v858
  %v1306 = vunpack.c.h.b16 %v858
  %v1307 = vunpack.c.l.b16 %v859
  %v1308 = vunpack.c.h.b16 %v859
  %v1309 = vunpack.c.l.b16 %v860
  %v1310 = vunpack.c.h.b16 %v860
  %v1311 = vunpack.c.l.b16 %v861
  %v1312 = vunpack.c.h.b16 %v861
  %v1313 = vunpack.c.l.b16 %v862
  %v1314 = vunpack.c.h.b16 %v862
  %v1315 = vunpack.c.l.b16 %v863
  %v1316 = vunpack.c.h.b16 %v863
  %v1317 = vunpack.c.l.b16 %v864
  %v1318 = vunpack.c.h.b16 %v864
  %v1319 = vunpack.c.l.b16 %v865
  %v1320 = vunpack.c.h.b16 %v865
  %v1321 = vunpack.c.l.b16 %v866
  %v1322 = vunpack.c.h.b16 %v866
  %v1323 = vunpack.c.l.b16 %v867
  %v1324 = vunpack.c.h.b16 %v867
  %v1325 = vunpack.c.l.b16 %v868
  %v1326 = vunpack.c.h.b16 %v868
  %v1327 = vunpack.c.l.b16 %v869
  %v1328 = vunpack.c.h.b16 %v869
  %v1329 = vunpack.c.l.b16 %v870
  %v1330 = vunpack.c.h.b16 %v870
  %v1331 = vunpack.c.l.b16 %v871
  %v1332 = vunpack.c.h.b16 %v871
  %v1333 = vunpack.c.l.b16 %v872
  %v1334 = vunpack.c.h.b16 %v872
  %v1335 = vunpack.c.l.b16 %v873
  %v1336 = vunpack.c.h.b16 %v873
  %v1337 = vunpack.c.l.b16 %v874
  %v1338 = vunpack.c.h.b16 %v874
  %v1339 = vunpack.c.l.b16 %v875
  %v1340 = vunpack.c.h.b16 %v875
  %v1341 = vunpack.c.l.b16 %v876
  %v1342 = vunpack.c.h.b16 %v876
  %v1343 = vunpack.c.l.b16 %v877
  %v1344 = vunpack.c.h.b16 %v877
  %v1345 = vunpack.c.l.b16 %v878
  %v1346 = vunpack.c.h.b16 %v878
  %v1347 = vunpack.c.l.b16 %v879
  %v1348 = vunpack.c.h.b16 %v879
  %v1349 = vunpack.c.l.b16 %v880
  %v1350 = vunpack.c.h.b16 %v880
  %v1351 = vunpack.c.l.b16 %v881
  %v1352 = vunpack.c.h.b16 %v881
  %v1353 = vunpack.c.l.b16 %v882
  %v1354 = vunpack.c.h.b16 %v882
  %v1355 = vunpack.c.l.b16 %v883
  %v1356 = vunpack.c.h.b16 %v883
  %v1357 = vunpack.c.l.b16 %v884
  %v1358 = vunpack.c.h.b16 %v884
  %v1359 = vunpack.c.l.b16 %v885
  %v1360 = vunpack.c.h.b16 %v885
  %v1361 = vunpack.c.l.b16 %v886
  %v1362 = vunpack.c.h.b16 %v886
  %v1363 = vunpack.c.l.b16 %v887
  %v1364 = vunpack.c.h.b16 %v887
  %v1365 = vunpack.c.l.b16 %v888
  %v1366 = vunpack.c.h.b16 %v888
  %v1367 = vunpack.c.l.b16 %v889
  %v1368 = vunpack.c.h.b16 %v889
  %v1369 = vunpack.c.l.b16 %v890
  %v1370 = vunpack.c.h.b16 %v890
  %v1371 = vunpack.c.l.b16 %v891
  %v1372 = vunpack.c.h.b16 %v891
  %v1373 = vunpack.c.l.b16 %v892
  %v1374 = vunpack.c.h.b16 %v892
  %v1375 = vunpack.c.l.b16 %v893
  %v1376 = vunpack.c.h.b16 %v893
  %v1377 = vunpack.c.l.b16 %v894
  %v1378 = vunpack.c.h.b16 %v894
  %v1379 = vunpack.c.l.b16 %v895
  %v1380 = vunpack.c.h.b16 %v895
  %v1381 = vunpack.c.l.b16 %v896
  %v1382 = vunpack.c.h.b16 %v896
  %v1383 = vunpack.c.l.b16 %v897
  %v1384 = vunpack.c.h.b16 %v897
  %v1385 = vunpack.c.l.b16 %v898
  %v1386 = vunpack.c.h.b16 %v898
  %v1387 = vunpack.c.l.b16 %v899
  %v1388 = vunpack.c.h.b16 %v899
  %v1389 = vunpack.c.l.b16 %v900
  %v1390 = vunpack.c.h.b16 %v900
  %v1391 = vunpack.c.l.b16 %v901
  %v1392 = vunpack.c.h.b16 %v901
  %v1393 = vunpack.c.l.b16 %v902
  %v1394 = vunpack.c.h.b16 %v902
  %v1395 = vunpack.c.l.b16 %v903
  %v1396 = vunpack.c.h.b16 %v903
  %v1397 = vunpack.c.l.b16 %v904
  %v1398 = vunpack.c.h.b16 %v904
  %v1399 = vunpack.c.l.b16 %v905
  %v1400 = vunpack.c.h.b16 %v905
  %v1401 = vunpack.c.l.b16 %v906
  %v1402 = vunpack.c.h.b16 %v906
  %v1403 = vunpack.c.l.b16 %v907
  %v1404 = vunpack.c.h.b16 %v907
  %v1405 = vunpack.c.l.b16 %v908
  %v1406 = vunpack.c.h.b16 %v908
  %v1407 = vunpack.c.l.b16 %v909
  %v1408 = vunpack.c.h.b16 %v909
  %v1409 = vunpack.c.l.b16 %v910
  %v1410 = vunpack.c.h.b16 %v910
  %v1411 = vunpack.c.l.b16 %v911
  %v1412 = vunpack.c.h.b16 %v911
  %v1413 = vunpack.c.l.b16 %v912
  %v1414 = vunpack.c.h.b16 %v912
  %v1415 = vunpack.c.l.b16 %v913
  %v1416 = vunpack.c.h.b16 %v913
  %v1417 = vunpack.c.l.b16 %v914
  %v1418 = vunpack.c.h.b16 %v914
  %v1419 = vunpack.c.l.b16 %v915
  %v1420 = vunpack.c.h.b16 %v915
  %v1421 = vunpack.c.l.b16 %v916
  %v1422 = vunpack.c.h.b16 %v916
  %v1423 = vunpack.c.l.b16 %v917
  %v1424 = vunpack.c.h.b16 %v917
  %v1425 = vunpack.c.l.b16 %v918
  %v1426 = vunpack.c.h.b16 %v918
  %v1427 = vunpack.c.l.b16 %v919
  %v1428 = vunpack.c.h.b16 %v919
  %v1429 = vunpack.c.l.b16 %v920
  %v1430 = vunpack.c.h.b16 %v920
  %v1431 = vunpack.c.l.b16 %v921
  %v1432 = vunpack.c.h.b16 %v921
  %v1433 = vunpack.c.l.b16 %v922
  %v1434 = vunpack.c.h.b16 %v922
  %v1435 = vunpack.c.l.b16 %v923
  %v1436 = vunpack.c.h.b16 %v923
  %v1437 = vunpack.c.l.b16 %v924
  %v1438 = vunpack.c.h.b16 %v924
  %v1439 = vunpack.c.l.b16 %v925
  %v1440 = vunpack.c.h.b16 %v925
  %v1441 = vunpack.c.l.b16 %v926
  %v1442 = vunpack.c.h.b16 %v926
  %v1443 = vunpack.c.l.b16 %v927
  %v1444 = vunpack.c.h.b16 %v927
  %v1445 = vunpack.c.l.b16 %v928
  %v1446 = vunpack.c.h.b16 %v928
  %v1447 = vunpack.c.l.b16 %v929
  %v1448 = vunpack.c.h.b16 %v929
  %v1449 = vunpack.c.l.b16 %v930
  %v1450 = vunpack.c.h.b16 %v930
  %v1451 = vunpack.c.l.b16 %v931
  %v1452 = vunpack.c.h.b16 %v931
  %v1453 = vunpack.c.l.b16 %v932
  %v1454 = vunpack.c.h.b16 %v932
  %v1455 = vunpack.c.l.b16 %v933
  %v1456 = vunpack.c.h.b16 %v933
  %v1457 = vunpack.c.l.b16 %v934
  %v1458 = vunpack.c.h.b16 %v934
  %v1459 = vunpack.c.l.b16 %v935
  %v1460 = vunpack.c.h.b16 %v935
  %v1461 = vunpack.c.l.b16 %v936
  %v1462 = vunpack.c.h.b16 %v936
  %v1463 = vunpack.c.l.b16 %v937
  %v1464 = vunpack.c.h.b16 %v937
  %v1465 = vunpack.c.l.b16 %v938
  %v1466 = vunpack.c.h.b16 %v938
  %v1467 = vunpack.c.l.b16 %v939
  %v1468 = vunpack.c.h.b16 %v939
  %v1469 = vunpack.c.l.b16 %v940
  %v1470 = vunpack.c.h.b16 %v940
  %v1471 = vunpack.c.l.b16 %v941
  %v1472 = vunpack.c.h.b16 %v941
  %v1473 = vunpack.c.l.b16 %v942
  %v1474 = vunpack.c.h.b16 %v942
  %v1475 = vunpack.c.l.b16 %v943
  %v1476 = vunpack.c.h.b16 %v943
  %v1477 = vunpack.c.l.b16 %v944
  %v1478 = vunpack.c.h.b16 %v944
  %v1479 = vunpack.c.l.b16 %v945
  %v1480 = vunpack.c.h.b16 %v945
  %v1481 = vunpack.c.l.b16 %v946
  %v1482 = vunpack.c.h.b16 %v946
  %v1483 = vunpack.c.l.b16 %v947
  %v1484 = vunpack.c.h.b16 %v947
  %v1485 = vunpack.c.l.b16 %v948
  %v1486 = vunpack.c.h.b16 %v948
  %v1487 = vunpack.c.l.b16 %v949
  %v1488 = vunpack.c.h.b16 %v949
  %v1489 = vunpack.c.l.b16 %v950
  %v1490 = vunpack.c.h.b16 %v950
  %v1491 = vunpack.c.l.b16 %v951
  %v1492 = vunpack.c.h.b16 %v951
  %v1493 = vunpack.c.l.b16 %v952
  %v1494 = vunpack.c.h.b16 %v952
  %v1495 = vunpack.c.l.b16 %v953
  %v1496 = vunpack.c.h.b16 %v953
  %v1497 = vunpack.c.l.b16 %v954
  %v1498 = vunpack.c.h.b16 %v954
  %v1499 = vunpack.c.l.b16 %v955
  %v1500 = vunpack.c.h.b16 %v955
  %v1501 = vunpack.c.l.b16 %v956
  %v1502 = vunpack.c.h.b16 %v956
  %v1503 = vunpack.c.l.b16 %v957
  %v1504 = vunpack.c.h.b16 %v957
  %v1505 = vunpack.c.l.b16 %v958
  %v1506 = vunpack.c.h.b16 %v958
  %v1507 = vunpack.c.l.b16 %v959
  %v1508 = vunpack.c.h.b16 %v959
  %v1509 = vpack.c.b16 %v1191, %v1189
  %v1510 = vpack.c.b16 %v1192, %v1190
  %v1511 = vpack.c.b16 %v1195, %v1193
  %v1512 = vpack.c.b16 %v1196, %v1194
  %v1513 = vpack.c.b16 %v1199, %v1197
  %v1514 = vpack.c.b16 %v1200, %v1198
  %v1515 = vpack.c.b16 %v1203, %v1201
  %v1516 = vpack.c.b16 %v1204, %v1202
  %v1517 = vpack.c.b16 %v1207, %v1205
  %v1518 = vpack.c.b16 %v1208, %v1206
  %v1519 = vpack.c.b16 %v1211, %v1209
  %v1520 = vpack.c.b16 %v1212, %v1210
  %v1521 = vpack.c.b16 %v1215, %v1213
  %v1522 = vpack.c.b16 %v1216, %v1214
  %v1523 = vpack.c.b16 %v1219, %v1217
  %v1524 = vpack.c.b16 %v1220, %v1218
  %v1525 = vpack.c.b16 %v1223, %v1221
  %v1526 = vpack.c.b16 %v1224, %v1222
  %v1527 = vpack.c.b16 %v1227, %v1225
  %v1528 = vpack.c.b16 %v1228, %v1226
  %v1529 = vpack.c.b16 %v1231, %v1229
  %v1530 = vpack.c.b16 %v1232, %v1230
  %v1531 = vpack.c.b16 %v1235, %v1233
  %v1532 = vpack.c.b16 %v1236, %v1234
  %v1533 = vpack.c.b16 %v1239, %v1237
  %v1534 = vpack.c.b16 %v1240, %v1238
  %v1535 = vpack.c.b16 %v1243, %v1241
  %v1536 = vpack.c.b16 %v1244, %v1242
  %v1537 = vpack.c.b16 %v1247, %v1245
  %v1538 = vpack.c.b16 %v1248, %v1246
  %v1539 = vpack.c.b16 %v1251, %v1249
  %v1540 = vpack.c.b16 %v1252, %v1250
  %v1541 = vpack.c.b16 %v1255, %v1253
  %v1542 = vpack.c.b16 %v1256, %v1254
  %v1543 = vpack.c.b16 %v1259, %v1257
  %v1544 = vpack.c.b16 %v1260, %v1258
  %v1545 = vpack.c.b16 %v1263, %v1261
  %v1546 = vpack.c.b16 %v1264, %v1262
  %v1547 = vpack.c.b16 %v1267, %v1265
  %v1548 = vpack.c.b16 %v1268, %v1266
  %v1549 = vpack.c.b16 %v1271, %v1269
  %v1550 = vpack.c.b16 %v1272, %v1270
  %v1551 = vpack.c.b16 %v1275, %v1273
  %v1552 = vpack.c.b16 %v1276, %v1274
  %v1553 = vpack.c.b16 %v1279, %v1277
  %v1554 = vpack.c.b16 %v1280, %v1278
  %v1555 = vpack.c.b16 %v1283, %v1281
  %v1556 = vpack.c.b16 %v1284, %v1282
  %v1557 = vpack.c.b16 %v1287, %v1285
  %v1558 = vpack.c.b16 %v1288, %v1286
  %v1559 = vpack.c.b16 %v1291, %v1289
  %v1560 = vpack.c.b16 %v1292, %v1290
  %v1561 = vpack.c.b16 %v1295, %v1293
  %v1562 = vpack.c.b16 %v1296, %v1294
  %v1563 = vpack.c.b16 %v1299, %v1297
  %v1564 = vpack.c.b16 %v1300, %v1298
  %v1565 = vpack.c.b16 %v1303, %v1301
  %v1566 = vpack.c.b16 %v1304, %v1302
  %v1567 = vpack.c.b16 %v1307, %v1305
  %v1568 = vpack.c.b16 %v1308, %v1306
  %v1569 = vpack.c.b16 %v1311, %v1309
  %v1570 = vpack.c.b16 %v1312, %v1310
  %v1571 = vpack.c.b16 %v1315, %v1313
  %v1572 = vpack.c.b16 %v1316, %v1314
  %v1573 = vpack.c.b16 %v1319, %v1317
  %v1574 = vpack.c.b16 %v1320, %v1318
  %v1575 = vpack.c.b16 %v1323, %v1321
  %v1576 = vpack.c.b16 %v1324, %v1322
  %v1577 = vpack.c.b16 %v1327, %v1325
  %v1578 = vpack.c.b16 %v1328, %v1326
  %v1579 = vpack.c.b16 %v1331, %v1329
  %v1580 = vpack.c.b16 %v1332, %v1330
  %v1581 = vpack.c.b16 %v1335, %v1333
  %v1582 = vpack.c.b16 %v1336, %v1334
  %v1583 = vpack.c.b16 %v1339, %v1337
  %v1584 = vpack.c.b16 %v1340, %v1338
  %v1585 = vpack.c.b16 %v1343, %v1341
  %v1586 = vpack.c.b16 %v1344, %v1342
  %v1587 = vpack.c.b16 %v1347, %v1345
  %v1588 = vpack.c.b16 %v1348, %v1346
  %v1589 = vpack.c.b16 %v1351, %v1349
  %v1590 = vpack.c.b16 %v1352, %v1350
  %v1591 = vpack.c.b16 %v1355, %v1353
  %v1592 = vpack.c.b16 %v1356, %v1354
  %v1593 = vpack.c.b16 %v1359, %v1357
  %v1594 = vpack.c.b16 %v1360, %v1358
  %v1595 = vpack.c.b16 %v1363, %v1361
  %v1596 = vpack.c.b16 %v1364, %v1362
  %v1597 = vpack.c.b16 %v1367, %v1365
  %v1598 = vpack.c.b16 %v1368, %v1366
  %v1599 = vpack.c.b16 %v1371, %v1369
  %v1600 = vpack.c.b16 %v1372, %v1370
  %v1601 = vpack.c.b16 %v1375, %v1373
  %v1602 = vpack.c.b16 %v1376, %v1374
  %v1603 = vpack.c.b16 %v1379, %v1377
  %v1604 = vpack.c.b16 %v1380, %v1378
  %v1605 = vpack.c.b16 %v1383, %v1381
  %v1606 = vpack.c.b16 %v1384, %v1382
  %v1607 = vpack.c.b16 %v1387, %v1385
  %v1608 = vpack.c.b16 %v1388, %v1386
  %v1609 = vpack.c.b16 %v1391, %v1389
  %v1610 = vpack.c.b16 %v1392, %v1390
  %v1611 = vpack.c.b16 %v1395, %v1393
  %v1612 = vpack.c.b16 %v1396, %v1394
  %v1613 = vpack.c.b16 %v1399, %v1397
  %v1614 = vpack.c.b16 %v1400, %v1398
  %v1615 = vpack.c.b16 %v1403, %v1401
  %v1616 = vpack.c.b16 %v1404, %v1402
  %v1617 = vpack.c.b16 %v1407, %v1405
  %v1618 = vpack.c.b16 %v1408, %v1406
  %v1619 = vpack.c.b16 %v1411, %v1409
  %v1620 = vpack.c.b16 %v1412, %v1410
  %v1621 = vpack.c.b16 %v1415, %v1413
  %v1622 = vpack.c.b16 %v1416, %v1414
  %v1623 = vpack.c.b16 %v1419, %v1417
  %v1624 = vpack.c.b16 %v1420, %v1418
  %v1625 = vpack.c.b16 %v1423, %v1421
  %v1626 = vpack.c.b16 %v1424, %v1422
  %v1627 = vpack.c.b16 %v1427, %v1425
  %v1628 = vpack.c.b16 %v1428, %v1426
  %v1629 = vpack.c.b16 %v1431, %v1429
  %v1630 = vpack.c.b16 %v1432, %v1430
  %v1631 = vpack.c.b16 %v1435, %v1433
  %v1632 = vpack.c.b16 %v1436, %v1434
  %v1633 = vpack.c.b16 %v1439, %v1437
  %v1634 = vpack.c.b16 %v1440, %v1438
  %v1635 = vpack.c.b16 %v1443, %v1441
  %v1636 = vpack.c.b16 %v1444, %v1442
  %v1637 = vpack.c.b16 %v1447, %v1445
  %v1638 = vpack.c.b16 %v1448, %v1446
  %v1639 = vpack.c.b16 %v1451, %v1449
  %v1640 = vpack.c.b16 %v1452, %v1450
  %v1641 = vpack.c.b16 %v1455, %v1453
  %v1642 = vpack.c.b16 %v1456, %v1454
  %v1643 = vpack.c.b16 %v1459, %v1457
  %v1644 = vpack.c.b16 %v1460, %v1458
  %v1645 = vpack.c.b16 %v1463, %v1461
  %v1646 = vpack.c.b16 %v1464, %v1462
  %v1647 = vpack.c.b16 %v1467, %v1465
  %v1648 = vpack.c.b16 %v1468, %v1466
  %v1649 = vpack.c.b16 %v1471, %v1469
  %v1650 = vpack.c.b16 %v1472, %v1470
  %v1651 = vpack.c.b16 %v1475, %v1473
  %v1652 = vpack.c.b16 %v1476, %v1474
  %v1653 = vpack.c.b16 %v1479, %v1477
  %v1654 = vpack.c.b16 %v1480, %v1478
  %v1655 = vpack.c.b16 %v1483, %v1481
  %v1656 = vpack.c.b16 %v1484, %v1482
  %v1657 = vpack.c.b16 %v1487, %v1485
  %v1658 = vpack.c.b16 %v1488, %v1486
  %v1659 = vpack.c.b16 %v1491, %v1489
  %v1660 = vpack.c.b16 %v1492, %v1490
  %v1661 = vpack.c.b16 %v1495, %v1493
  %v1662 = vpack.c.b16 %v1496, %v1494
  %v1663 = vpack.c.b16 %v1499, %v1497
  %v1664 = vpack.c.b16 %v1500, %v1498
  %v1665 = vpack.c.b16 %v1503, %v1501
  %v1666 = vpack.c.b16 %v1504, %v1502
  %v1667 = vpack.c.b16 %v1507, %v1505
  %v1668 = vpack.c.b16 %v1508, %v1506
  %1829 = vmatprep.subr.bf16.mxu0 %v1510
  %1830 = vmatpush1.bf16.msra.mxu0 %v1509
  %1831 = vmatprep.subr.bf16.mxu0 %v1512
  %1832 = vmatpush1.bf16.msra.mxu0 %v1511
  %1833 = vmatprep.subr.bf16.mxu0 %v1514
  %1834 = vmatpush1.bf16.msra.mxu0 %v1513
  %1835 = vmatprep.subr.bf16.mxu0 %v1516
  %1836 = vmatpush1.bf16.msra.mxu0 %v1515
  %1837 = vmatprep.subr.bf16.mxu0 %v1518
  %1838 = vmatpush1.bf16.msra.mxu0 %v1517
  %1839 = vmatprep.subr.bf16.mxu0 %v1520
  %1840 = vmatpush1.bf16.msra.mxu0 %v1519
  %1841 = vmatprep.subr.bf16.mxu0 %v1522
  %1842 = vmatpush1.bf16.msra.mxu0 %v1521
  %1843 = vmatprep.subr.bf16.mxu0 %v1524
  %1844 = vmatpush1.bf16.msra.mxu0 %v1523
  %1845 = vmatprep.subr.bf16.mxu0 %v1526
  %1846 = vmatpush1.bf16.msra.mxu0 %v1525
  %1847 = vmatprep.subr.bf16.mxu0 %v1528
  %1848 = vmatpush1.bf16.msra.mxu0 %v1527
  %1849 = vmatprep.subr.bf16.mxu0 %v1530
  %1850 = vmatpush1.bf16.msra.mxu0 %v1529
  %1851 = vmatprep.subr.bf16.mxu0 %v1532
  %1852 = vmatpush1.bf16.msra.mxu0 %v1531
  %1853 = vmatprep.subr.bf16.mxu0 %v1534
  %1854 = vmatpush1.bf16.msra.mxu0 %v1533
  %1855 = vmatprep.subr.bf16.mxu0 %v1536
  %1856 = vmatpush1.bf16.msra.mxu0 %v1535
  %1857 = vmatprep.subr.bf16.mxu0 %v1538
  %1858 = vmatpush1.bf16.msra.mxu0 %v1537
  %1859 = vmatprep.subr.bf16.mxu0 %v1540
  %1860 = vmatpush1.bf16.msra.mxu0 %v1539
  %1861 = vmatprep.mubr.bf16.mxu0 %v791
  %1862 = vmatmul.mubr.bf16.gmra.mrb[0].mxu0 %v790
  %v1863 = vpop.f32.mrb[0].mxu0
  %v1864 = vadd.f32 %v1023, %v1863
  %v1865 = vpop.f32.mrb[0].mxu0
  %v1866 = vadd.f32 %v1025, %v1865
  %v1867 = vpop.f32.mrb[0].mxu0
  %v1868 = vpop.f32.mrb[0].mxu0
  %1869 = vdwg.mxu0
  %1870 = vmatprep.subr.bf16.mxu0 %v1542
  %1871 = vmatpush1.bf16.msra.mxu0 %v1541
  %1872 = vmatprep.subr.bf16.mxu0 %v1544
  %1873 = vmatpush1.bf16.msra.mxu0 %v1543
  %1874 = vmatprep.subr.bf16.mxu0 %v1546
  %1875 = vmatpush1.bf16.msra.mxu0 %v1545
  %1876 = vmatprep.subr.bf16.mxu0 %v1548
  %1877 = vmatpush1.bf16.msra.mxu0 %v1547
  %1878 = vmatprep.subr.bf16.mxu0 %v1550
  %1879 = vmatpush1.bf16.msra.mxu0 %v1549
  %1880 = vmatprep.subr.bf16.mxu0 %v1552
  %1881 = vmatpush1.bf16.msra.mxu0 %v1551
  %1882 = vmatprep.subr.bf16.mxu0 %v1554
  %1883 = vmatpush1.bf16.msra.mxu0 %v1553
  %1884 = vmatprep.subr.bf16.mxu0 %v1556
  %1885 = vmatpush1.bf16.msra.mxu0 %v1555
  %1886 = vmatprep.subr.bf16.mxu0 %v1558
  %1887 = vmatpush1.bf16.msra.mxu0 %v1557
  %1888 = vmatprep.subr.bf16.mxu0 %v1560
  %1889 = vmatpush1.bf16.msra.mxu0 %v1559
  %1890 = vmatprep.subr.bf16.mxu0 %v1562
  %1891 = vmatpush1.bf16.msra.mxu0 %v1561
  %1892 = vmatprep.subr.bf16.mxu0 %v1564
  %1893 = vmatpush1.bf16.msra.mxu0 %v1563
  %1894 = vmatprep.subr.bf16.mxu0 %v1566
  %1895 = vmatpush1.bf16.msra.mxu0 %v1565
  %1896 = vmatprep.subr.bf16.mxu0 %v1568
  %1897 = vmatpush1.bf16.msra.mxu0 %v1567
  %1898 = vmatprep.subr.bf16.mxu0 %v1570
  %1899 = vmatpush1.bf16.msra.mxu0 %v1569
  %1900 = vmatprep.subr.bf16.mxu0 %v1572
  %1901 = vmatpush1.bf16.msra.mxu0 %v1571
  %1902 = vmatprep.mubr.bf16.mxu0 %v793
  %1903 = vmatmul.mubr.bf16.gmra.mrb[0].mxu0 %v792
  %v1904 = vpop.f32.mrb[0].mxu0
  %v1905 = vadd.f32 %v1864, %v1904
  %v1906 = vpop.f32.mrb[0].mxu0
  %v1907 = vadd.f32 %v1866, %v1906
  %v1908 = vpop.f32.mrb[0].mxu0
  %v1909 = vpop.f32.mrb[0].mxu0
  %1910 = vdwg.mxu0
  %1911 = vmatprep.subr.bf16.mxu0 %v1574
  %1912 = vmatpush1.bf16.msra.mxu0 %v1573
  %1913 = vmatprep.subr.bf16.mxu0 %v1576
  %1914 = vmatpush1.bf16.msra.mxu0 %v1575
  %1915 = vmatprep.subr.bf16.mxu0 %v1578
  %1916 = vmatpush1.bf16.msra.mxu0 %v1577
  %1917 = vmatprep.subr.bf16.mxu0 %v1580
  %1918 = vmatpush1.bf16.msra.mxu0 %v1579
  %1919 = vmatprep.subr.bf16.mxu0 %v1582
  %1920 = vmatpush1.bf16.msra.mxu0 %v1581
  %1921 = vmatprep.subr.bf16.mxu0 %v1584
  %1922 = vmatpush1.bf16.msra.mxu0 %v1583
  %1923 = vmatprep.subr.bf16.mxu0 %v1586
  %1924 = vmatpush1.bf16.msra.mxu0 %v1585
  %1925 = vmatprep.subr.bf16.mxu0 %v1588
  %1926 = vmatpush1.bf16.msra.mxu0 %v1587
  %1927 = vmatprep.subr.bf16.mxu0 %v1590
  %1928 = vmatpush1.bf16.msra.mxu0 %v1589
  %1929 = vmatprep.subr.bf16.mxu0 %v1592
  %1930 = vmatpush1.bf16.msra.mxu0 %v1591
  %1931 = vmatprep.subr.bf16.mxu0 %v1594
  %1932 = vmatpush1.bf16.msra.mxu0 %v1593
  %1933 = vmatprep.subr.bf16.mxu0 %v1596
  %1934 = vmatpush1.bf16.msra.mxu0 %v1595
  %1935 = vmatprep.subr.bf16.mxu0 %v1598
  %1936 = vmatpush1.bf16.msra.mxu0 %v1597
  %1937 = vmatprep.subr.bf16.mxu0 %v1600
  %1938 = vmatpush1.bf16.msra.mxu0 %v1599
  %1939 = vmatprep.subr.bf16.mxu0 %v1602
  %1940 = vmatpush1.bf16.msra.mxu0 %v1601
  %1941 = vmatprep.subr.bf16.mxu0 %v1604
  %1942 = vmatpush1.bf16.msra.mxu0 %v1603
  %1943 = vmatprep.mubr.bf16.mxu0 %v795
  %1944 = vmatmul.mubr.bf16.gmra.mrb[0].mxu0 %v794
  %v1945 = vpop.f32.mrb[0].mxu0
  %v1946 = vadd.f32 %v1905, %v1945
  %v1947 = vpop.f32.mrb[0].mxu0
  %v1948 = vadd.f32 %v1907, %v1947
  %v1949 = vpop.f32.mrb[0].mxu0
  %v1950 = vpop.f32.mrb[0].mxu0
  %1951 = vdwg.mxu0
  %1952 = vmatprep.subr.bf16.mxu0 %v1606
  %1953 = vmatpush1.bf16.msra.mxu0 %v1605
  %1954 = vmatprep.subr.bf16.mxu0 %v1608
  %1955 = vmatpush1.bf16.msra.mxu0 %v1607
  %1956 = vmatprep.subr.bf16.mxu0 %v1610
  %1957 = vmatpush1.bf16.msra.mxu0 %v1609
  %1958 = vmatprep.subr.bf16.mxu0 %v1612
  %1959 = vmatpush1.bf16.msra.mxu0 %v1611
  %1960 = vmatprep.subr.bf16.mxu0 %v1614
  %1961 = vmatpush1.bf16.msra.mxu0 %v1613
  %1962 = vmatprep.subr.bf16.mxu0 %v1616
  %1963 = vmatpush1.bf16.msra.mxu0 %v1615
  %1964 = vmatprep.subr.bf16.mxu0 %v1618
  %1965 = vmatpush1.bf16.msra.mxu0 %v1617
  %1966 = vmatprep.subr.bf16.mxu0 %v1620
  %1967 = vmatpush1.bf16.msra.mxu0 %v1619
  %1968 = vmatprep.subr.bf16.mxu0 %v1622
  %1969 = vmatpush1.bf16.msra.mxu0 %v1621
  %1970 = vmatprep.subr.bf16.mxu0 %v1624
  %1971 = vmatpush1.bf16.msra.mxu0 %v1623
  %1972 = vmatprep.subr.bf16.mxu0 %v1626
  %1973 = vmatpush1.bf16.msra.mxu0 %v1625
  %1974 = vmatprep.subr.bf16.mxu0 %v1628
  %1975 = vmatpush1.bf16.msra.mxu0 %v1627
  %1976 = vmatprep.subr.bf16.mxu0 %v1630
  %1977 = vmatpush1.bf16.msra.mxu0 %v1629
  %1978 = vmatprep.subr.bf16.mxu0 %v1632
  %1979 = vmatpush1.bf16.msra.mxu0 %v1631
  %1980 = vmatprep.subr.bf16.mxu0 %v1634
  %1981 = vmatpush1.bf16.msra.mxu0 %v1633
  %1982 = vmatprep.subr.bf16.mxu0 %v1636
  %1983 = vmatpush1.bf16.msra.mxu0 %v1635
  %1984 = vmatprep.mubr.bf16.mxu0 %v797
  %1985 = vmatmul.mubr.bf16.gmra.mrb[0].mxu0 %v796
  %v1986 = vpop.f32.mrb[0].mxu0
  %v1987 = vadd.f32 %v1946, %v1986
  %v1988 = vpop.f32.mrb[0].mxu0
  %v1989 = vadd.f32 %v1948, %v1988
  %v1990 = vpop.f32.mrb[0].mxu0
  %v1991 = vpop.f32.mrb[0].mxu0
  %1992 = vdwg.mxu0
  %1993 = vmatprep.subr.bf16.mxu0 %v1638
  %1994 = vmatpush1.bf16.msra.mxu0 %v1637
  %1995 = vmatprep.subr.bf16.mxu0 %v1640
  %1996 = vmatpush1.bf16.msra.mxu0 %v1639
  %1997 = vmatprep.subr.bf16.mxu0 %v1642
  %1998 = vmatpush1.bf16.msra.mxu0 %v1641
  %1999 = vmatprep.subr.bf16.mxu0 %v1644
  %2000 = vmatpush1.bf16.msra.mxu0 %v1643
  %2001 = vmatprep.subr.bf16.mxu0 %v1646
  %2002 = vmatpush1.bf16.msra.mxu0 %v1645
  %2003 = vmatprep.subr.bf16.mxu0 %v1648
  %2004 = vmatpush1.bf16.msra.mxu0 %v1647
  %2005 = vmatprep.subr.bf16.mxu0 %v1650
  %2006 = vmatpush1.bf16.msra.mxu0 %v1649
  %2007 = vmatprep.subr.bf16.mxu0 %v1652
  %2008 = vmatpush1.bf16.msra.mxu0 %v1651
  %2009 = vmatprep.subr.bf16.mxu0 %v1654
  %2010 = vmatpush1.bf16.msra.mxu0 %v1653
  %2011 = vmatprep.subr.bf16.mxu0 %v1656
  %2012 = vmatpush1.bf16.msra.mxu0 %v1655
  %2013 = vmatprep.subr.bf16.mxu0 %v1658
  %2014 = vmatpush1.bf16.msra.mxu0 %v1657
  %2015 = vmatprep.subr.bf16.mxu0 %v1660
  %2016 = vmatpush1.bf16.msra.mxu0 %v1659
  %2017 = vmatprep.subr.bf16.mxu0 %v1662
  %2018 = vmatpush1.bf16.msra.mxu0 %v1661
  %2019 = vmatprep.subr.bf16.mxu0 %v1664
  %2020 = vmatpush1.bf16.msra.mxu0 %v1663
  %2021 = vmatprep.subr.bf16.mxu0 %v1666
  %2022 = vmatpush1.bf16.msra.mxu0 %v1665
  %2023 = vmatprep.subr.bf16.mxu0 %v1668
  %2024 = vmatpush1.bf16.msra.mxu0 %v1667
  %2025 = vmatprep.mubr.bf16.mxu0 %v799
  %2026 = vmatmul.mubr.bf16.gmra.mrb[0].mxu0 %v798
  %v2027 = vpop.f32.mrb[0].mxu0
  %v2028 = vadd.f32 %v1987, %v2027
  %v2029 = vpop.f32.mrb[0].mxu0
  %v2030 = vadd.f32 %v1989, %v2029
  %v2031 = vpop.f32.mrb[0].mxu0
  %v2032 = vpop.f32.mrb[0].mxu0
  %2033 = vdwg.mxu0
  %v2034 = vld [vmem:[%s12] sm:$0x3]
  %v2036 = vlaneseq
  %v2037 = vshrl.u32 %v2036, 7
  %v2038 = vsub.s32 0, %v2037
  %v2039 = vrot.slane %v2034, %v2038
  %v2040 = vlaneseq
  %v2041 = vshrl.u32 %v2040, 7
  %v2042 = vsub.s32 1, %v2041
  %v2043 = vrot.slane %v2034, %v2042
  %v2046 = vadd.f32 %v2028, %v2039
  %v2047 = vadd.f32 %v2030, %v2043
  %v2048 = vmax.f32 %v2046, 0.0
  %v2049 = vmax.f32 %v2047, 0.0
  %v2050 = vpack.c.bf16 %v2048, %v2048
  %v2051 = vpack.c.bf16 %v2049, %v2049
  %v2052 = vld [vmem:[%s13] sm:$0xf]
  %v2053 = vld [vmem:[%s13 + $0x4] sm:$0xf]
  %v2054 = vld [vmem:[%s13 + $0x8] sm:$0xf]
  %v2055 = vld [vmem:[%s13 + $0xc] sm:$0xf]
  %v2056 = vld [vmem:[%s13 + $0x10] sm:$0xf]
  %v2057 = vld [vmem:[%s13 + $0x14] sm:$0xf]
  %v2058 = vld [vmem:[%s13 + $0x18] sm:$0xf]
  %v2059 = vld [vmem:[%s13 + $0x1c] sm:$0xf]
  %v2060 = vld [vmem:[%s13 + $0x20] sm:$0xf]
  %v2061 = vld [vmem:[%s13 + $0x24] sm:$0xf]
  %v2062 = vld [vmem:[%s13 + $0x28] sm:$0xf]
  %v2063 = vld [vmem:[%s13 + $0x2c] sm:$0xf]
  %v2064 = vld [vmem:[%s13 + $0x30] sm:$0xf]
  %v2065 = vld [vmem:[%s13 + $0x34] sm:$0xf]
  %v2066 = vld [vmem:[%s13 + $0x38] sm:$0xf]
  %v2067 = vld [vmem:[%s13 + $0x3c] sm:$0xf]
  %v2068 = vld [vmem:[%s13 + $0x40] sm:$0xf]
  %v2069 = vld [vmem:[%s13 + $0x44] sm:$0xf]
  %v2070 = vld [vmem:[%s13 + $0x48] sm:$0xf]
  %v2071 = vld [vmem:[%s13 + $0x4c] sm:$0xf]
  %v2072 = vld [vmem:[%s13 + $0x50] sm:$0xf]
  %v2073 = vld [vmem:[%s13 + $0x54] sm:$0xf]
  %v2074 = vld [vmem:[%s13 + $0x58] sm:$0xf]
  %v2075 = vld [vmem:[%s13 + $0x5c] sm:$0xf]
  %v2076 = vld [vmem:[%s13 + $0x60] sm:$0xf]
  %v2077 = vld [vmem:[%s13 + $0x64] sm:$0xf]
  %v2078 = vld [vmem:[%s13 + $0x68] sm:$0xf]
  %v2079 = vld [vmem:[%s13 + $0x6c] sm:$0xf]
  %v2080 = vld [vmem:[%s13 + $0x70] sm:$0xf]
  %v2081 = vld [vmem:[%s13 + $0x74] sm:$0xf]
  %v2082 = vld [vmem:[%s13 + $0x78] sm:$0xf]
  %v2083 = vld [vmem:[%s13 + $0x7c] sm:$0xf]
  %v2084 = vld [vmem:[%s14] sm:$0x1]
  %v2086 = vlaneseq
  %v2087 = vshrl.u32 %v2086, 7
  %v2088 = vsub.s32 0, %v2087
  %v2089 = vrot.slane %v2084, %v2088
  %v2123 = vunpack.c.l.b16 %v2052
  %v2124 = vunpack.c.l.b16 %v2053
  %v2125 = vunpack.c.l.b16 %v2054
  %v2126 = vunpack.c.l.b16 %v2055
  %v2127 = vunpack.c.l.b16 %v2056
  %v2128 = vunpack.c.l.b16 %v2057
  %v2129 = vunpack.c.l.b16 %v2058
  %v2130 = vunpack.c.l.b16 %v2059
  %v2131 = vunpack.c.l.b16 %v2060
  %v2132 = vunpack.c.l.b16 %v2061
  %v2133 = vunpack.c.l.b16 %v2062
  %v2134 = vunpack.c.l.b16 %v2063
  %v2135 = vunpack.c.l.b16 %v2064
  %v2136 = vunpack.c.l.b16 %v2065
  %v2137 = vunpack.c.l.b16 %v2066
  %v2138 = vunpack.c.l.b16 %v2067
  %v2139 = vunpack.c.l.b16 %v2068
  %v2140 = vunpack.c.l.b16 %v2069
  %v2141 = vunpack.c.l.b16 %v2070
  %v2142 = vunpack.c.l.b16 %v2071
  %v2143 = vunpack.c.l.b16 %v2072
  %v2144 = vunpack.c.l.b16 %v2073
  %v2145 = vunpack.c.l.b16 %v2074
  %v2146 = vunpack.c.l.b16 %v2075
  %v2147 = vunpack.c.l.b16 %v2076
  %v2148 = vunpack.c.l.b16 %v2077
  %v2149 = vunpack.c.l.b16 %v2078
  %v2150 = vunpack.c.l.b16 %v2079
  %v2151 = vunpack.c.l.b16 %v2080
  %v2152 = vunpack.c.l.b16 %v2081
  %v2153 = vunpack.c.l.b16 %v2082
  %v2154 = vunpack.c.l.b16 %v2083
  %v2155 = vpack.c.b16 %v2124, %v2123
  %v2156 = vpack.c.b16 %v2126, %v2125
  %v2157 = vpack.c.b16 %v2128, %v2127
  %v2158 = vpack.c.b16 %v2130, %v2129
  %v2159 = vpack.c.b16 %v2132, %v2131
  %v2160 = vpack.c.b16 %v2134, %v2133
  %v2161 = vpack.c.b16 %v2136, %v2135
  %v2162 = vpack.c.b16 %v2138, %v2137
  %v2163 = vpack.c.b16 %v2140, %v2139
  %v2164 = vpack.c.b16 %v2142, %v2141
  %v2165 = vpack.c.b16 %v2144, %v2143
  %v2166 = vpack.c.b16 %v2146, %v2145
  %v2167 = vpack.c.b16 %v2148, %v2147
  %v2168 = vpack.c.b16 %v2150, %v2149
  %v2169 = vpack.c.b16 %v2152, %v2151
  %v2170 = vpack.c.b16 %v2154, %v2153
  %2187 = vmatprep.subr.bf16.mxu0 0
  %2188 = vmatpush1.bf16.msra.mxu0 %v2155
  %2189 = vmatprep.subr.bf16.mxu0 0
  %2190 = vmatpush1.bf16.msra.mxu0 %v2156
  %2191 = vmatprep.subr.bf16.mxu0 0
  %2192 = vmatpush1.bf16.msra.mxu0 %v2157
  %2193 = vmatprep.subr.bf16.mxu0 0
  %2194 = vmatpush1.bf16.msra.mxu0 %v2158
  %2195 = vmatprep.subr.bf16.mxu0 0
  %2196 = vmatpush1.bf16.msra.mxu0 %v2159
  %2197 = vmatprep.subr.bf16.mxu0 0
  %2198 = vmatpush1.bf16.msra.mxu0 %v2160
  %2199 = vmatprep.subr.bf16.mxu0 0
  %2200 = vmatpush1.bf16.msra.mxu0 %v2161
  %2201 = vmatprep.subr.bf16.mxu0 0
  %2202 = vmatpush1.bf16.msra.mxu0 %v2162
  %2203 = vmatprep.subr.bf16.mxu0 0
  %2204 = vmatpush1.bf16.msra.mxu0 %v2163
  %2205 = vmatprep.subr.bf16.mxu0 0
  %2206 = vmatpush1.bf16.msra.mxu0 %v2164
  %2207 = vmatprep.subr.bf16.mxu0 0
  %2208 = vmatpush1.bf16.msra.mxu0 %v2165
  %2209 = vmatprep.subr.bf16.mxu0 0
  %2210 = vmatpush1.bf16.msra.mxu0 %v2166
  %2211 = vmatprep.subr.bf16.mxu0 0
  %2212 = vmatpush1.bf16.msra.mxu0 %v2167
  %2213 = vmatprep.subr.bf16.mxu0 0
  %2214 = vmatpush1.bf16.msra.mxu0 %v2168
  %2215 = vmatprep.subr.bf16.mxu0 0
  %2216 = vmatpush1.bf16.msra.mxu0 %v2169
  %2217 = vmatprep.subr.bf16.mxu0 0
  %2218 = vmatpush1.bf16.msra.mxu0 %v2170
  %2219 = vmatprep.mubr.bf16.mxu0 %v2051
  %2220 = vmatmul.mubr.bf16.gmra.mrb[0].mxu0 %v2050
  %v2221 = vpop.f32.mrb[0].mxu0
  %v2222 = vadd.f32 %v2089, %v2221
  %v2223 = vpop.f32.mrb[0].mxu0
  %v2224 = vpop.f32.mrb[0].mxu0
  %v2225 = vpop.f32.mrb[0].mxu0
  %2226 = vdwg.mxu0
  %v2227 = vmax.f32 %v2222, 0.0
  %v2228 = vpack.c.bf16 %v2227, %v2227
  %v2229 = vld [vmem:[%s15] sm:$0xf]
  %v2230 = vld [vmem:[%s15 + $0x4] sm:$0xf]
  %v2231 = vld [vmem:[%s15 + $0x8] sm:$0xf]
  %v2232 = vld [vmem:[%s15 + $0xc] sm:$0xf]
  %v2233 = vld [vmem:[%s15 + $0x10] sm:$0xf]
  %v2234 = vld [vmem:[%s15 + $0x14] sm:$0xf]
  %v2235 = vld [vmem:[%s15 + $0x18] sm:$0xf]
  %v2236 = vld [vmem:[%s15 + $0x1c] sm:$0xf]
  %v2237 = vld [vmem:[%s15 + $0x20] sm:$0xf]
  %v2238 = vld [vmem:[%s15 + $0x24] sm:$0xf]
  %v2239 = vld [vmem:[%s15 + $0x28] sm:$0xf]
  %v2240 = vld [vmem:[%s15 + $0x2c] sm:$0xf]
  %v2241 = vld [vmem:[%s15 + $0x30] sm:$0xf]
  %v2242 = vld [vmem:[%s15 + $0x34] sm:$0xf]
  %v2243 = vld [vmem:[%s15 + $0x38] sm:$0xf]
  %v2244 = vld [vmem:[%s15 + $0x3c] sm:$0xf]
  %v2245 = vld [vmem:[%s16] sm:$0x1]
  %v2247 = vlaneseq
  %v2248 = vshrl.u32 %v2247, 7
  %v2249 = vsub.s32 0, %v2248
  %v2250 = vrot.slane %v2245, %v2249
  %v2268 = vunpack.c.l.b16 %v2229
  %v2269 = vunpack.c.l.b16 %v2230
  %v2270 = vunpack.c.l.b16 %v2231
  %v2271 = vunpack.c.l.b16 %v2232
  %v2272 = vunpack.c.l.b16 %v2233
  %v2273 = vunpack.c.l.b16 %v2234
  %v2274 = vunpack.c.l.b16 %v2235
  %v2275 = vunpack.c.l.b16 %v2236
  %v2276 = vunpack.c.l.b16 %v2237
  %v2277 = vunpack.c.l.b16 %v2238
  %v2278 = vunpack.c.l.b16 %v2239
  %v2279 = vunpack.c.l.b16 %v2240
  %v2280 = vunpack.c.l.b16 %v2241
  %v2281 = vunpack.c.l.b16 %v2242
  %v2282 = vunpack.c.l.b16 %v2243
  %v2283 = vunpack.c.l.b16 %v2244
  %v2284 = vpack.c.b16 %v2269, %v2268
  %v2285 = vpack.c.b16 %v2271, %v2270
  %v2286 = vpack.c.b16 %v2273, %v2272
  %v2287 = vpack.c.b16 %v2275, %v2274
  %v2288 = vpack.c.b16 %v2277, %v2276
  %v2289 = vpack.c.b16 %v2279, %v2278
  %v2290 = vpack.c.b16 %v2281, %v2280
  %v2291 = vpack.c.b16 %v2283, %v2282
  %2300 = vmatprep.subr.bf16.mxu0 0
  %2301 = vmatpush1.bf16.msra.mxu0 %v2284
  %2302 = vmatprep.subr.bf16.mxu0 0
  %2303 = vmatpush1.bf16.msra.mxu0 %v2285
  %2304 = vmatprep.subr.bf16.mxu0 0
  %2305 = vmatpush1.bf16.msra.mxu0 %v2286
  %2306 = vmatprep.subr.bf16.mxu0 0
  %2307 = vmatpush1.bf16.msra.mxu0 %v2287
  %2308 = vmatprep.subr.bf16.mxu0 0
  %2309 = vmatpush1.bf16.msra.mxu0 %v2288
  %2310 = vmatprep.subr.bf16.mxu0 0
  %2311 = vmatpush1.bf16.msra.mxu0 %v2289
  %2312 = vmatprep.subr.bf16.mxu0 0
  %2313 = vmatpush1.bf16.msra.mxu0 %v2290
  %2314 = vmatprep.subr.bf16.mxu0 0
  %2315 = vmatpush1.bf16.msra.mxu0 %v2291
  %2316 = vmatprep.subr.bf16.mxu0 0
  %2317 = vmatpush1.bf16.msra.mxu0 0
  %2318 = vmatprep.subr.bf16.mxu0 0
  %2319 = vmatpush1.bf16.msra.mxu0 0
  %2320 = vmatprep.subr.bf16.mxu0 0
  %2321 = vmatpush1.bf16.msra.mxu0 0
  %2322 = vmatprep.subr.bf16.mxu0 0
  %2323 = vmatpush1.bf16.msra.mxu0 0
  %2324 = vmatprep.subr.bf16.mxu0 0
  %2325 = vmatpush1.bf16.msra.mxu0 0
  %2326 = vmatprep.subr.bf16.mxu0 0
  %2327 = vmatpush1.bf16.msra.mxu0 0
  %2328 = vmatprep.subr.bf16.mxu0 0
  %2329 = vmatpush1.bf16.msra.mxu0 0
  %2330 = vmatprep.subr.bf16.mxu0 0
  %2331 = vmatpush1.bf16.msra.mxu0 0
  %2332 = vmatprep.mubr.bf16.mxu0 0
  %2333 = vmatmul.mubr.bf16.gmra.mrb[0].mxu0 %v2228
  %v2334 = vpop.f32.mrb[0].mxu0
  %v2335 = vadd.f32 %v2250, %v2334
  %v2336 = vpop.f32.mrb[0].mxu0
  %v2337 = vpop.f32.mrb[0].mxu0
  %v2338 = vpop.f32.mrb[0].mxu0
  %2339 = vdwg.mxu0
  %2340 = vst [vmem:[%s17] sm:$0xff] %v2335
  // Predicated region
  $region70: #{enhanced_crop_classifier_forward.1} parent=0 // pred_check
    _
  $region71: #{enhanced_crop_classifier_forward.1} parent=0 // pred_check_branch
    %2342 = sbr.rel (0) target = $region73
  $region72: #{enhanced_crop_classifier_forward.1} parent=0 // pred_region
    _
  $region73: #{enhanced_crop_classifier_forward.1} parent=0 // pred_fallthru
    _
  // Predicated region
  $region74: #{enhanced_crop_classifier_forward.1} parent=0 // pred_check
    _
  $region75: #{enhanced_crop_classifier_forward.1} parent=0 // pred_check_branch
    %2344 = sbr.rel (0) target = $region77
  $region76: #{enhanced_crop_classifier_forward.1} parent=0 // pred_region
    _
  $region77: #{enhanced_crop_classifier_forward.1} parent=0 // pred_fallthru
    _

</llo_original>
